<compile_context>
chip_gen: v5e
topology: v5e:2x2
jax: 0.10.0
libtpu: 0.0.40
codegen_flags: <defaults>
</compile_context>

<pallas_src>
import functools

import jax
import jax.numpy as jnp
from jax.experimental import pallas as pl
from jax.experimental.pallas import tpu as pltpu

DIMS = [784, 256, 128, 64, 32, 16, 16, 10]
N_LAYERS = len(DIMS) - 1
N_CLASSES = DIMS[-1]
OUT_LANES = 128  # lane-dense output block width

# Packed layout of layers 1..6 inside w_rest: padded in-dims (rows) and row offsets.
_REST_ROWS = [256, 128, 128, 128, 128, 128]
_REST_OFFS = [0, 256, 384, 512, 640, 768]
_REST_TOTAL_ROWS = sum(_REST_ROWS)  # 896


def mlp_kernel(x_ref, w0_ref, wr_ref, b_ref, out_ref):
    b_all = b_ref[...]  # (7, 256) f32, resident

    # Layer 0: [tile_b, 784] bf16 @ [784, 256] bf16 on the MXU, f32 accumulation.
    h = jnp.dot(x_ref[...], w0_ref[...], preferred_element_type=jnp.float32)
    h = jnp.maximum(h + b_all[0:1, 0:256], 0.0)               # (tile_b, 256) f32

    # Layers 1..6: zero-padded 128-lane blocks sliced statically from the packed slab.
    for li in range(1, N_LAYERS):
        off = _REST_OFFS[li - 1]
        rows = _REST_ROWS[li - 1]
        w = wr_ref[off:off + rows, :]                         # (rows, 128) bf16
        h = jnp.dot(h.astype(jnp.bfloat16), w,
                    preferred_element_type=jnp.float32)
        h = h + b_all[li:li + 1, 0:128]
        if li < N_LAYERS - 1:
            h = jnp.maximum(h, 0.0)                           # (tile_b, 128) f32

    # Numerically stable softmax over the 10 real classes, computed on the full
    # 128-lane tile so the store stays lane-dense (padded lanes written as 0).
    lane = jax.lax.broadcasted_iota(jnp.int32, h.shape, 1)    # (tile_b, 128)
    valid = lane < N_CLASSES
    logits = jnp.where(valid, h, jnp.full_like(h, -1e30))
    m = jnp.max(logits, axis=1, keepdims=True)
    e = jnp.exp(logits - m)
    e = jnp.where(valid, e, 0.0)                              # exact zeros in padded lanes
    s = jnp.sum(e, axis=1, keepdims=True)
    out_ref[...] = (e * pl.reciprocal(s, approx=True)).astype(out_ref.dtype)


def _pick_tile_b(batch):
    """Largest tile in {1024,512,256} that divides the 128-rounded batch and keeps
    >= 2 grid steps (v7x megacore); otherwise 128."""
    padded = ((batch + 127) // 128) * 128
    for t in (1024, 512, 256):
        if padded % t == 0 and padded // t >= 2:
            return t
    return 128


@functools.partial(jax.jit, static_argnames=("tile_b",))
def _net_v1_forward_impl(x, w0, w_rest, b_packed, *, tile_b):
    batch = x.shape[0]
    padded = ((batch + tile_b - 1) // tile_b) * tile_b
    # Fused bf16 cast + batch pad: a single producer fusion feeding the kernel's x DMA
    # (no extra f32 round-trip through HBM).
    x_in = jnp.pad(x.astype(jnp.bfloat16), ((0, padded - batch), (0, 0)))

    out = pl.pallas_call(
        mlp_kernel,
        out_shape=jax.ShapeDtypeStruct((padded, OUT_LANES), jnp.float32),
        grid=(padded // tile_b,),
        in_specs=[
            pl.BlockSpec((tile_b, DIMS[0]), lambda i: (i, 0)),          # x: batch-tiled bf16
            pl.BlockSpec((DIMS[0], DIMS[1]), lambda i: (0, 0)),         # w0: resident
            pl.BlockSpec((_REST_TOTAL_ROWS, 128), lambda i: (0, 0)),    # w_rest: resident
            pl.BlockSpec((N_LAYERS, 256), lambda i: (0, 0)),            # biases: resident
        ],
        out_specs=pl.BlockSpec((tile_b, OUT_LANES), lambda i: (i, 0)),  # lane-dense output
        compiler_params=pltpu.CompilerParams(
            dimension_semantics=("parallel",),
        ),
    )(x_in, w0, w_rest, b_packed)
    return out[:batch, :N_CLASSES]


def net_v1_forward(x, w0, w_rest, b_packed, *, tile_b=None):
    if tile_b is None:
        tile_b = _pick_tile_b(x.shape[0])
    return _net_v1_forward_impl(x, w0, w_rest, b_packed, tile_b=tile_b)


def init_params(key):
    """Per-layer f32 params, PyTorch nn.Linear-style init; weights stored as [in, out]."""
    ws, bs = [], []
    for i in range(N_LAYERS):
        d_in, d_out = DIMS[i], DIMS[i + 1]
        key, kw, kb = jax.random.split(key, 3)
        bound = 1.0 / (d_in ** 0.5)
        ws.append(jax.random.uniform(kw, (d_in, d_out), jnp.float32, -bound, bound))
        bs.append(jax.random.uniform(kb, (d_out,), jnp.float32, -bound, bound))
    return ws, bs


def pack_params(ws, bs):
    """Pack 14 small params into 3 TPU-friendly operands (2x bf16 weights + 1x f32 biases)."""
    w0 = ws[0].astype(jnp.bfloat16)                                        # (784, 256)
    blocks = []
    for i in range(1, N_LAYERS):
        w = ws[i]
        r_target = _REST_ROWS[i - 1]
        blocks.append(jnp.pad(w, ((0, r_target - w.shape[0]), (0, 128 - w.shape[1]))))
    w_rest = jnp.concatenate(blocks, axis=0).astype(jnp.bfloat16)          # (896, 128)
    b_packed = jnp.stack(
        [jnp.pad(b, (0, 256 - b.shape[0])) for b in bs], axis=0
    ).astype(jnp.float32)                                                  # (7, 256)
    return w0, w_rest, b_packed


def reference_forward(x, ws, bs):
    """Pure-JAX reference mirroring the kernel's bf16-weight / f32-accumulate math."""
    h = x
    for i in range(N_LAYERS):
        h = jnp.dot(h.astype(jnp.bfloat16), ws[i].astype(jnp.bfloat16),
                    preferred_element_type=jnp.float32) + bs[i]
        if i < N_LAYERS - 1:
            h = jnp.maximum(h, 0.0)
    return jax.nn.softmax(h, axis=1)


if __name__ == "__main__":
    key = jax.random.PRNGKey(0)
    key, kx = jax.random.split(key)

    batch = 200                      # pads to 256 -> two grid steps at tile_b=128
    x = jax.random.normal(kx, (batch, DIMS[0]), jnp.float32)

    ws, bs = init_params(key)
    w0, w_rest, b_packed = pack_params(ws, bs)

    out = net_v1_forward(x, w0, w_rest, b_packed)
    out = jax.block_until_ready(out)

    # Sanity: shape, softmax rows ~1, and cross-check vs pure-JAX reference.
    assert out.shape == (batch, N_CLASSES)
    assert bool(jnp.all(jnp.abs(jnp.sum(out, axis=1) - 1.0) < 5e-3))

    ref = reference_forward(x, ws, bs)
    assert bool(jnp.max(jnp.abs(out - ref)) < 1e-2)   # bf16 weights/x + approx reciprocal

    print("KERNEL_OK")
</pallas_src>

<mosaic_0001>
module attributes {stable_mosaic.version = 11 : i64} {
  func.func @mlp_kernel(%arg0: i32, %arg1: memref<128x784xbf16, #tpu.memory_space<vmem>>, %arg2: memref<784x256xbf16, #tpu.memory_space<vmem>>, %arg3: memref<896x128xbf16, #tpu.memory_space<vmem>>, %arg4: memref<7x256xf32, #tpu.memory_space<vmem>>, %arg5: memref<128x128xf32, #tpu.memory_space<vmem>>) attributes {dimension_semantics = [#tpu.dimension_semantics<parallel>], iteration_bounds = array<i64: 2>, scalar_prefetch = 0 : i64, scratch_operands = 0 : i64, tpu.core_type = #tpu.core_type<tc>, window_params = [{transform_indices = @transform_0, window_bounds = array<i64: 128, 784>}, {pipeline_mode = #tpu.pipeline_mode<synchronous>, transform_indices = @transform_1, window_bounds = array<i64: 784, 256>}, {pipeline_mode = #tpu.pipeline_mode<synchronous>, transform_indices = @transform_2, window_bounds = array<i64: 896, 128>}, {pipeline_mode = #tpu.pipeline_mode<synchronous>, transform_indices = @transform_3, window_bounds = array<i64: 7, 256>}, {transform_indices = @transform_4, window_bounds = array<i64: 128, 128>}]} {
    %c0 = arith.constant 0 : index
    %c0_0 = arith.constant 0 : index
    %0 = vector.load %arg4[%c0, %c0_0] : memref<7x256xf32, #tpu.memory_space<vmem>>, vector<7x256xf32>
    %c0_1 = arith.constant 0 : index
    %c0_2 = arith.constant 0 : index
    %1 = vector.load %arg1[%c0_1, %c0_2] : memref<128x784xbf16, #tpu.memory_space<vmem>>, vector<128x784xbf16>
    %c0_3 = arith.constant 0 : index
    %c0_4 = arith.constant 0 : index
    %2 = vector.load %arg2[%c0_3, %c0_4] : memref<784x256xbf16, #tpu.memory_space<vmem>>, vector<784x256xbf16>
    %cst = arith.constant dense<0.000000e+00> : vector<128x256xf32>
    %3 = tpu.matmul %1, %2, %cst {dimension_numbers = #tpu.dot_dimension_numbers<[1], [0], [0], [1], [0, 0, 1, 1], [], []>} : vector<128x784xbf16>, vector<784x256xbf16>, vector<128x256xf32> -> vector<128x256xf32>
    %4 = vector.extract_strided_slice %0 {offsets = [0, 0], sizes = [1, 256], strides = [1, 1]} : vector<7x256xf32> to vector<1x256xf32>
    %5 = vector.broadcast %4 : vector<1x256xf32> to vector<128x256xf32>
    %6 = arith.addf %3, %5 : vector<128x256xf32>
    %cst_5 = arith.constant 0.000000e+00 : f32
    %7 = vector.broadcast %cst_5 : f32 to vector<128x256xf32>
    %8 = arith.maximumf %6, %7 : vector<128x256xf32>
    %c0_6 = arith.constant 0 : index
    %c0_7 = arith.constant 0 : index
    %9 = vector.load %arg3[%c0_6, %c0_7] : memref<896x128xbf16, #tpu.memory_space<vmem>>, vector<256x128xbf16>
    %10 = arith.truncf %8 : vector<128x256xf32> to vector<128x256xbf16>
    %cst_8 = arith.constant dense<0.000000e+00> : vector<128x128xf32>
    %11 = tpu.matmul %10, %9, %cst_8 {dimension_numbers = #tpu.dot_dimension_numbers<[1], [0], [0], [1], [0, 0, 1, 1], [], []>} : vector<128x256xbf16>, vector<256x128xbf16>, vector<128x128xf32> -> vector<128x128xf32>
    %12 = vector.extract_strided_slice %0 {offsets = [1, 0], sizes = [1, 128], strides = [1, 1]} : vector<7x256xf32> to vector<1x128xf32>
    %13 = vector.broadcast %12 : vector<1x128xf32> to vector<128x128xf32>
    %14 = arith.addf %11, %13 : vector<128x128xf32>
    %cst_9 = arith.constant 0.000000e+00 : f32
    %15 = vector.broadcast %cst_9 : f32 to vector<128x128xf32>
    %16 = arith.maximumf %14, %15 : vector<128x128xf32>
    %c256 = arith.constant 256 : index
    %c0_10 = arith.constant 0 : index
    %17 = vector.load %arg3[%c256, %c0_10] : memref<896x128xbf16, #tpu.memory_space<vmem>>, vector<128x128xbf16>
    %18 = arith.truncf %16 : vector<128x128xf32> to vector<128x128xbf16>
    %cst_11 = arith.constant dense<0.000000e+00> : vector<128x128xf32>
    %19 = tpu.matmul %18, %17, %cst_11 {dimension_numbers = #tpu.dot_dimension_numbers<[1], [0], [0], [1], [0, 0, 1, 1], [], []>} : vector<128x128xbf16>, vector<128x128xbf16>, vector<128x128xf32> -> vector<128x128xf32>
    %20 = vector.extract_strided_slice %0 {offsets = [2, 0], sizes = [1, 128], strides = [1, 1]} : vector<7x256xf32> to vector<1x128xf32>
    %21 = vector.broadcast %20 : vector<1x128xf32> to vector<128x128xf32>
    %22 = arith.addf %19, %21 : vector<128x128xf32>
    %cst_12 = arith.constant 0.000000e+00 : f32
    %23 = vector.broadcast %cst_12 : f32 to vector<128x128xf32>
    %24 = arith.maximumf %22, %23 : vector<128x128xf32>
    %c384 = arith.constant 384 : index
    %c0_13 = arith.constant 0 : index
    %25 = vector.load %arg3[%c384, %c0_13] : memref<896x128xbf16, #tpu.memory_space<vmem>>, vector<128x128xbf16>
    %26 = arith.truncf %24 : vector<128x128xf32> to vector<128x128xbf16>
    %cst_14 = arith.constant dense<0.000000e+00> : vector<128x128xf32>
    %27 = tpu.matmul %26, %25, %cst_14 {dimension_numbers = #tpu.dot_dimension_numbers<[1], [0], [0], [1], [0, 0, 1, 1], [], []>} : vector<128x128xbf16>, vector<128x128xbf16>, vector<128x128xf32> -> vector<128x128xf32>
    %28 = vector.extract_strided_slice %0 {offsets = [3, 0], sizes = [1, 128], strides = [1, 1]} : vector<7x256xf32> to vector<1x128xf32>
    %29 = vector.broadcast %28 : vector<1x128xf32> to vector<128x128xf32>
    %30 = arith.addf %27, %29 : vector<128x128xf32>
    %cst_15 = arith.constant 0.000000e+00 : f32
    %31 = vector.broadcast %cst_15 : f32 to vector<128x128xf32>
    %32 = arith.maximumf %30, %31 : vector<128x128xf32>
    %c512 = arith.constant 512 : index
    %c0_16 = arith.constant 0 : index
    %33 = vector.load %arg3[%c512, %c0_16] : memref<896x128xbf16, #tpu.memory_space<vmem>>, vector<128x128xbf16>
    %34 = arith.truncf %32 : vector<128x128xf32> to vector<128x128xbf16>
    %cst_17 = arith.constant dense<0.000000e+00> : vector<128x128xf32>
    %35 = tpu.matmul %34, %33, %cst_17 {dimension_numbers = #tpu.dot_dimension_numbers<[1], [0], [0], [1], [0, 0, 1, 1], [], []>} : vector<128x128xbf16>, vector<128x128xbf16>, vector<128x128xf32> -> vector<128x128xf32>
    %36 = vector.extract_strided_slice %0 {offsets = [4, 0], sizes = [1, 128], strides = [1, 1]} : vector<7x256xf32> to vector<1x128xf32>
    %37 = vector.broadcast %36 : vector<1x128xf32> to vector<128x128xf32>
    %38 = arith.addf %35, %37 : vector<128x128xf32>
    %cst_18 = arith.constant 0.000000e+00 : f32
    %39 = vector.broadcast %cst_18 : f32 to vector<128x128xf32>
    %40 = arith.maximumf %38, %39 : vector<128x128xf32>
    %c640 = arith.constant 640 : index
    %c0_19 = arith.constant 0 : index
    %41 = vector.load %arg3[%c640, %c0_19] : memref<896x128xbf16, #tpu.memory_space<vmem>>, vector<128x128xbf16>
    %42 = arith.truncf %40 : vector<128x128xf32> to vector<128x128xbf16>
    %cst_20 = arith.constant dense<0.000000e+00> : vector<128x128xf32>
    %43 = tpu.matmul %42, %41, %cst_20 {dimension_numbers = #tpu.dot_dimension_numbers<[1], [0], [0], [1], [0, 0, 1, 1], [], []>} : vector<128x128xbf16>, vector<128x128xbf16>, vector<128x128xf32> -> vector<128x128xf32>
    %44 = vector.extract_strided_slice %0 {offsets = [5, 0], sizes = [1, 128], strides = [1, 1]} : vector<7x256xf32> to vector<1x128xf32>
    %45 = vector.broadcast %44 : vector<1x128xf32> to vector<128x128xf32>
    %46 = arith.addf %43, %45 : vector<128x128xf32>
    %cst_21 = arith.constant 0.000000e+00 : f32
    %47 = vector.broadcast %cst_21 : f32 to vector<128x128xf32>
    %48 = arith.maximumf %46, %47 : vector<128x128xf32>
    %c768 = arith.constant 768 : index
    %c0_22 = arith.constant 0 : index
    %49 = vector.load %arg3[%c768, %c0_22] : memref<896x128xbf16, #tpu.memory_space<vmem>>, vector<128x128xbf16>
    %50 = arith.truncf %48 : vector<128x128xf32> to vector<128x128xbf16>
    %cst_23 = arith.constant dense<0.000000e+00> : vector<128x128xf32>
    %51 = tpu.matmul %50, %49, %cst_23 {dimension_numbers = #tpu.dot_dimension_numbers<[1], [0], [0], [1], [0, 0, 1, 1], [], []>} : vector<128x128xbf16>, vector<128x128xbf16>, vector<128x128xf32> -> vector<128x128xf32>
    %52 = vector.extract_strided_slice %0 {offsets = [6, 0], sizes = [1, 128], strides = [1, 1]} : vector<7x256xf32> to vector<1x128xf32>
    %53 = vector.broadcast %52 : vector<1x128xf32> to vector<128x128xf32>
    %54 = arith.addf %51, %53 : vector<128x128xf32>
    %55 = tpu.iota {dimensions = array<i32: 1>} : vector<128x128xi32>
    %c10_i32 = arith.constant 10 : i32
    %56 = vector.broadcast %c10_i32 : i32 to vector<128x128xi32>
    %57 = arith.cmpi slt, %55, %56 : vector<128x128xi32>
    %cst_24 = arith.constant -1.000000e+30 : f32
    %58 = vector.broadcast %cst_24 : f32 to vector<128x128xf32>
    %59 = arith.select %57, %54, %58 : vector<128x128xi1>, vector<128x128xf32>
    %cst_25 = arith.constant dense<0xFF800000> : vector<128xf32>
    %60 = vector.multi_reduction <maximumf>, %59, %cst_25 [1] : vector<128x128xf32> to vector<128xf32>
    %61 = vector.shape_cast %60 : vector<128xf32> to vector<128x1xf32>
    %62 = vector.broadcast %61 : vector<128x1xf32> to vector<128x128xf32>
    %63 = arith.subf %59, %62 : vector<128x128xf32>
    %64 = math.exp %63 : vector<128x128xf32>
    %cst_26 = arith.constant 0.000000e+00 : f32
    %65 = vector.broadcast %cst_26 : f32 to vector<128x128xf32>
    %66 = arith.select %57, %64, %65 : vector<128x128xi1>, vector<128x128xf32>
    %cst_27 = arith.constant dense<0.000000e+00> : vector<128xf32>
    %67 = vector.multi_reduction <add>, %66, %cst_27 [1] : vector<128x128xf32> to vector<128xf32>
    %68 = vector.shape_cast %67 : vector<128xf32> to vector<128x1xf32>
    %69 = tpu.reciprocal %68 {approx = true} : vector<128x1xf32> -> vector<128x1xf32>
    %70 = vector.broadcast %69 : vector<128x1xf32> to vector<128x128xf32>
    %71 = arith.mulf %66, %70 : vector<128x128xf32>
    %c0_28 = arith.constant 0 : index
    %c0_29 = arith.constant 0 : index
    %72 = vector.load %arg5[%c0_28, %c0_29] : memref<128x128xf32, #tpu.memory_space<vmem>>, vector<128x128xf32>
    tpu.vector_store %arg5[%c0_28, %c0_29], %71 {strides = array<i32>} : memref<128x128xf32, #tpu.memory_space<vmem>>, vector<128x128xf32>,
    return
  }
  func.func @transform_0(%arg0: i32) -> (i32, i32) {
    %c0_i32 = arith.constant 0 : i32
    %c0_i32_0 = arith.constant 0 : i32
    return %arg0, %c0_i32 : i32, i32
  }
  func.func @transform_1(%arg0: i32) -> (i32, i32) {
    %c0_i32 = arith.constant 0 : i32
    %c0_i32_0 = arith.constant 0 : i32
    %c0_i32_1 = arith.constant 0 : i32
    return %c0_i32, %c0_i32_0 : i32, i32
  }
  func.func @transform_2(%arg0: i32) -> (i32, i32) {
    %c0_i32 = arith.constant 0 : i32
    %c0_i32_0 = arith.constant 0 : i32
    %c0_i32_1 = arith.constant 0 : i32
    return %c0_i32, %c0_i32_0 : i32, i32
  }
  func.func @transform_3(%arg0: i32) -> (i32, i32) {
    %c0_i32 = arith.constant 0 : i32
    %c0_i32_0 = arith.constant 0 : i32
    %c0_i32_1 = arith.constant 0 : i32
    return %c0_i32, %c0_i32_0 : i32, i32
  }
  func.func @transform_4(%arg0: i32) -> (i32, i32) {
    %c0_i32 = arith.constant 0 : i32
    %c0_i32_0 = arith.constant 0 : i32
    return %arg0, %c0_i32 : i32, i32
  }
}

</mosaic_0001>

<llo_original>
// kernel: _net_v1_forward_impl.1
$region0: #{_net_v1_forward_impl.1}
  #allocation0 [shape = 'u32[]', space=smem, size = 0x4, offset = 0x4, fixed_abs, tag = 'smem constant byte address 0x4 - core index']
  #allocation1 [shape = 'u32[72,128]{1,0:T(1,128)}', space=vmem, size = 0x9000, scoped, tag = 'internal scratch']
  %s0 = inlined_call_operand.vmem [shape: bf16[256,784], index: 0, kind: input, shape index: {}]
  %s1 = inlined_call_operand.vmem [shape: bf16[784,256], index: 1, kind: input, shape index: {}]
  %s2 = inlined_call_operand.vmem [shape: bf16[896,128], index: 2, kind: input, shape index: {}]
  %s3 = inlined_call_operand.vmem [shape: f32[7,256], index: 3, kind: input, shape index: {}]
  %s4 = inlined_call_operand.vmem [shape: f32[256,128], index: 4, kind: output, shape index: {}]
  %s5 = sld [smem:[#allocation0]]
  $region49: #{_net_v1_forward_impl.1} parent=0
    _
  %s7 = ssub.s32 1, %s5
  %s8 = scalar_select 0, %s7, %s5
  loop: start=0, step=1, limit=4
  $region2: #{_net_v1_forward_impl.1} parent=0 // loop_pre_header
    _
  $region3: #{_net_v1_forward_impl.1} parent=0 // loop_header
    %s10 = sphi 0, %s14
    %p11 = scmp.ge.s32.totalorder %s10, 4
    %s20 = sphi 0, %s22
    %s23 = sphi 0, %s20
    %s24 = sphi 0, %s23
    %s40 = sphi 0, %s24
    %s44 = sphi 0, %s44
    %s46 = sphi 0, %s44
    %s47 = sphi 0, %s46
    %s61 = sphi 0, %s47
    %s65 = sphi 0, %s65
    %s67 = sphi 0, %s65
    %s68 = sphi 0, %s67
    %s82 = sphi 0, %s68
    %s86 = sphi 0, %s86
    %s88 = sphi 0, %s86
    %s89 = sphi 0, %s88
    %s103 = sphi 0, %s89
    %s109 = sphi 0, %s111
    %s112 = sphi 0, %s109
    %s113 = sphi 0, %s112
    %s129 = sphi 0, %s113
  $region4: #{_net_v1_forward_impl.1} parent=0 // loop_header_branch
    %13 = sbr.rel (%p11) target = $region8
  $region5: #{_net_v1_forward_impl.1} parent=0 // loop_body
    %s15 = ssub.s32 %s10, 1
    %s16 = ssub.s32 %s10, 2
    %s17 = sadd.s32 %s10, 1
    %s18 = ssub.s32 %s10, %s17
    %p19 = scmp.eq.s32.totalorder %s18, 0
    %s21 = sadd.s32 %s20, 1
    %s22 = scalar_select %p19, %s20, %s21
    %p25 = pneg %p19
    %p26 = scmp.eq.s32.totalorder %s10, 1
    %p27 = por %p25, %p26
    %p28 = scmp.ne.s32.totalorder %s20, %s23
    %p29 = scmp.eq.s32.totalorder %s10, 0
    %p30 = por %p28, %p29
    %p31 = scmp.ne.s32.totalorder %s20, %s23
    %p32 = scmp.eq.s32.totalorder %s15, 1
    %p33 = por %p31, %p32
    %p34 = scmp.ne.s32.totalorder %s23, %s24
    %p35 = scmp.eq.s32.totalorder %s15, 0
    %p36 = por %p34, %p35
    %p37 = scmp.ne.s32.totalorder %s23, %s24
    %p38 = scmp.eq.s32.totalorder %s16, 1
    %p39 = por %p37, %p38
    %p41 = scmp.ne.s32.totalorder %s24, %s40
    %p42 = scmp.eq.s32.totalorder %s16, 0
    %p43 = por %p41, %p42
    %s45 = sadd.s32 %s44, 1
    %p48 = scmp.eq.s32.totalorder %s10, 1
    %p49 = scmp.ne.s32.totalorder %s44, %s46
    %p50 = scmp.eq.s32.totalorder %s10, 0
    %p51 = por %p49, %p50
    %p52 = scmp.ne.s32.totalorder %s44, %s46
    %p53 = scmp.eq.s32.totalorder %s15, 1
    %p54 = por %p52, %p53
    %p55 = scmp.ne.s32.totalorder %s46, %s47
    %p56 = scmp.eq.s32.totalorder %s15, 0
    %p57 = por %p55, %p56
    %p58 = scmp.ne.s32.totalorder %s46, %s47
    %p59 = scmp.eq.s32.totalorder %s16, 1
    %p60 = por %p58, %p59
    %p62 = scmp.ne.s32.totalorder %s47, %s61
    %p63 = scmp.eq.s32.totalorder %s16, 0
    %p64 = por %p62, %p63
    %s66 = sadd.s32 %s65, 1
    %p69 = scmp.eq.s32.totalorder %s10, 1
    %p70 = scmp.ne.s32.totalorder %s65, %s67
    %p71 = scmp.eq.s32.totalorder %s10, 0
    %p72 = por %p70, %p71
    %p73 = scmp.ne.s32.totalorder %s65, %s67
    %p74 = scmp.eq.s32.totalorder %s15, 1
    %p75 = por %p73, %p74
    %p76 = scmp.ne.s32.totalorder %s67, %s68
    %p77 = scmp.eq.s32.totalorder %s15, 0
    %p78 = por %p76, %p77
    %p79 = scmp.ne.s32.totalorder %s67, %s68
    %p80 = scmp.eq.s32.totalorder %s16, 1
    %p81 = por %p79, %p80
    %p83 = scmp.ne.s32.totalorder %s68, %s82
    %p84 = scmp.eq.s32.totalorder %s16, 0
    %p85 = por %p83, %p84
    %s87 = sadd.s32 %s86, 1
    %p90 = scmp.eq.s32.totalorder %s10, 1
    %p91 = scmp.ne.s32.totalorder %s86, %s88
    %p92 = scmp.eq.s32.totalorder %s10, 0
    %p93 = por %p91, %p92
    %p94 = scmp.ne.s32.totalorder %s86, %s88
    %p95 = scmp.eq.s32.totalorder %s15, 1
    %p96 = por %p94, %p95
    %p97 = scmp.ne.s32.totalorder %s88, %s89
    %p98 = scmp.eq.s32.totalorder %s15, 0
    %p99 = por %p97, %p98
    %p100 = scmp.ne.s32.totalorder %s88, %s89
    %p101 = scmp.eq.s32.totalorder %s16, 1
    %p102 = por %p100, %p101
    %p104 = scmp.ne.s32.totalorder %s89, %s103
    %p105 = scmp.eq.s32.totalorder %s16, 0
    %p106 = por %p104, %p105
    %s107 = ssub.s32 %s10, %s17
    %p108 = scmp.eq.s32.totalorder %s107, 0
    %s110 = sadd.s32 %s109, 1
    %s111 = scalar_select %p108, %s109, %s110
    %p114 = pneg %p108
    %p115 = scmp.eq.s32.totalorder %s10, 1
    %p116 = por %p114, %p115
    %p117 = scmp.ne.s32.totalorder %s109, %s112
    %p118 = scmp.eq.s32.totalorder %s10, 0
    %p119 = por %p117, %p118
    %p120 = scmp.ne.s32.totalorder %s109, %s112
    %p121 = scmp.eq.s32.totalorder %s15, 1
    %p122 = por %p120, %p121
    %p123 = scmp.ne.s32.totalorder %s112, %s113
    %p124 = scmp.eq.s32.totalorder %s15, 0
    %p125 = por %p123, %p124
    %p126 = scmp.ne.s32.totalorder %s112, %s113
    %p127 = scmp.eq.s32.totalorder %s16, 1
    %p128 = por %p126, %p127
    %p130 = scmp.ne.s32.totalorder %s113, %s129
    %p131 = scmp.eq.s32.totalorder %s16, 0
    %p132 = por %p130, %p131
    %p133 = scmp.le.s32.totalorder 1, %s10
    %p134 = scmp.lt.s32.totalorder %s10, 3
    %p135 = pnand %p133, %p134
    %p136 = pneg %p135
    // Predicated region
    $region9: #{_net_v1_forward_impl.1} parent=5 // pred_check
      _
    $region10: #{_net_v1_forward_impl.1} parent=5 // pred_check_branch
      %138 = sbr.rel (%p135) target = $region12
    $region11: #{_net_v1_forward_impl.1} parent=5 // pred_region
      %s139 = ssub.s32 %s10, 1
      // Predicated region
      $region13: #{_net_v1_forward_impl.1} parent=11 // pred_check
        %p140 = pneg %p57
      $region14: #{_net_v1_forward_impl.1} parent=11 // pred_check_branch
        %142 = sbr.rel (%p140) target = $region16
      $region15: #{_net_v1_forward_impl.1} parent=11 // pred_region
        _
      $region16: #{_net_v1_forward_impl.1} parent=11 // pred_fallthru
        _
      // Predicated region
      $region17: #{_net_v1_forward_impl.1} parent=11 // pred_check
        %p143 = pneg %p78
      $region18: #{_net_v1_forward_impl.1} parent=11 // pred_check_branch
        %145 = sbr.rel (%p143) target = $region20
      $region19: #{_net_v1_forward_impl.1} parent=11 // pred_region
        _
      $region20: #{_net_v1_forward_impl.1} parent=11 // pred_fallthru
        _
      // Predicated region
      $region21: #{_net_v1_forward_impl.1} parent=11 // pred_check
        %p146 = pneg %p99
      $region22: #{_net_v1_forward_impl.1} parent=11 // pred_check_branch
        %148 = sbr.rel (%p146) target = $region24
      $region23: #{_net_v1_forward_impl.1} parent=11 // pred_region
        _
      $region24: #{_net_v1_forward_impl.1} parent=11 // pred_fallthru
        _
    $region12: #{_net_v1_forward_impl.1} parent=5 // pred_fallthru
      _
    %p149 = scmp.lt.s32.totalorder %s10, 2
    // Predicated region
    $region25: #{_net_v1_forward_impl.1} parent=5 // pred_check
      %p150 = pneg %p149
    $region26: #{_net_v1_forward_impl.1} parent=5 // pred_check_branch
      %152 = sbr.rel (%p150) target = $region28
    $region27: #{_net_v1_forward_impl.1} parent=5 // pred_region
      // Predicated region
      $region29: #{_net_v1_forward_impl.1} parent=27 // pred_check
        %p153 = pneg %p30
      $region30: #{_net_v1_forward_impl.1} parent=27 // pred_check_branch
        %155 = sbr.rel (%p153) target = $region32
      $region31: #{_net_v1_forward_impl.1} parent=27 // pred_region
        %s156 = smul.u32 16, %s10
        %p157 = scmp.lt.s32.totalorder %s156, 31
        %s158 = scalar_select %p157, %s156, 31
        %s159 = smul.addr %s158, 7
        %s160 = smul.addr %s159, 4
        %s161 = scalar_lea.vmem %s0, %s160
        %s162 = smul.u32 16, %s10
      $region32: #{_net_v1_forward_impl.1} parent=27 // pred_fallthru
        _
    $region28: #{_net_v1_forward_impl.1} parent=5 // pred_fallthru
      _
    %p163 = scmp.le.s32.totalorder 1, %s10
    %p164 = scmp.lt.s32.totalorder %s10, 3
    %p165 = pnand %p163, %p164
    %p166 = pneg %p165
    // Predicated region
    $region33: #{_net_v1_forward_impl.1} parent=5 // pred_check
      _
    $region34: #{_net_v1_forward_impl.1} parent=5 // pred_check_branch
      %168 = sbr.rel (%p165) target = $region36
    $region35: #{_net_v1_forward_impl.1} parent=5 // pred_region
      %s169 = ssub.s32 %s10, 1
      %s170 = smul.u32 16, %s15
      %p171 = scmp.lt.s32.totalorder %s170, 31
      %s172 = scalar_select %p171, %s170, 31
      %s173 = smul.addr %s172, 7
      %s174 = smul.addr %s173, 4
      %s175 = scalar_lea.vmem %s0, %s174
      %p176 = pneg %p36
      %p177 = pneg %p33
      %p178 = pneg %p57
      %p179 = pneg %p54
      %p180 = pneg %p78
      %p181 = pneg %p75
      %p182 = pneg %p99
      %p183 = pneg %p96
      %p184 = pneg %p125
      %p185 = pneg %p122
      %s186 = smul.u32 16, %s15
      %p187 = scmp.lt.s32.totalorder %s186, 31
      %s188 = scalar_select %p187, %s186, 31
      %s189 = smul.addr %s188, 8
      %s190 = scalar_lea.vmem %s4, %s189
      %s191 = smul.u32 16, %s15
      %p192 = scmp.lt.s32.totalorder %s191, 31
      %s193 = scalar_select %p192, %s191, 31
      %s194 = smul.addr %s193, 7
      %s195 = smul.addr %s194, 4
      %s196 = scalar_lea.vmem %s0, %s195
      %s197 = smul.u32 16, %s15
      %s198 = smul.u32 16, %s15
      %p199 = scmp.lt.s32.totalorder %s198, 31
      %s200 = scalar_select %p199, %s198, 31
      %s201 = smul.addr %s200, 8
      %s202 = scalar_lea.vmem %s4, %s201
      %s203 = smul.u32 16, %s15
      %v205 = vld [vmem:[%s3] sm:$0x7f]
      %v206 = vld [vmem:[%s3 + $0x8] sm:$0x7f]
      %v207 = vld [vmem:[%s196] sm:$0xff]
      %v208 = vld [vmem:[%s196 + $0x8] sm:$0xff]
      %v209 = vld [vmem:[%s196 + $0x10] sm:$0xff]
      %v210 = vld [vmem:[%s196 + $0x18] sm:$0xf]
      %v211 = vld [vmem:[%s196 + $0x1c] sm:$0xff]
      %v212 = vld [vmem:[%s196 + $0x24] sm:$0xff]
      %v213 = vld [vmem:[%s196 + $0x2c] sm:$0xff]
      %v214 = vld [vmem:[%s196 + $0x34] sm:$0xf]
      %v215 = vld [vmem:[%s196 + $0x38] sm:$0xff]
      %v216 = vld [vmem:[%s196 + $0x40] sm:$0xff]
      %v217 = vld [vmem:[%s196 + $0x48] sm:$0xff]
      %v218 = vld [vmem:[%s196 + $0x50] sm:$0xf]
      %v219 = vld [vmem:[%s196 + $0x54] sm:$0xff]
      %v220 = vld [vmem:[%s196 + $0x5c] sm:$0xff]
      %v221 = vld [vmem:[%s196 + $0x64] sm:$0xff]
      %v222 = vld [vmem:[%s196 + $0x6c] sm:$0xf]
      %v223 = vld [vmem:[%s196 + $0x70] sm:$0xff]
      %v224 = vld [vmem:[%s196 + $0x78] sm:$0xff]
      %v225 = vld [vmem:[%s196 + $0x80] sm:$0xff]
      %v226 = vld [vmem:[%s196 + $0x88] sm:$0xf]
      %v227 = vld [vmem:[%s196 + $0x8c] sm:$0xff]
      %v228 = vld [vmem:[%s196 + $0x94] sm:$0xff]
      %v229 = vld [vmem:[%s196 + $0x9c] sm:$0xff]
      %v230 = vld [vmem:[%s196 + $0xa4] sm:$0xf]
      %v231 = vld [vmem:[%s196 + $0xa8] sm:$0xff]
      %v232 = vld [vmem:[%s196 + $0xb0] sm:$0xff]
      %v233 = vld [vmem:[%s196 + $0xb8] sm:$0xff]
      %v234 = vld [vmem:[%s196 + $0xc0] sm:$0xf]
      %v235 = vld [vmem:[%s196 + $0xc4] sm:$0xff]
      %v236 = vld [vmem:[%s196 + $0xcc] sm:$0xff]
      %v237 = vld [vmem:[%s196 + $0xd4] sm:$0xff]
      %v238 = vld [vmem:[%s196 + $0xdc] sm:$0xf]
      %v239 = vld [vmem:[%s196 + $0xe0] sm:$0xff]
      %v240 = vld [vmem:[%s196 + $0xe8] sm:$0xff]
      %v241 = vld [vmem:[%s196 + $0xf0] sm:$0xff]
      %v242 = vld [vmem:[%s196 + $0xf8] sm:$0xf]
      %v243 = vld [vmem:[%s196 + $0xfc] sm:$0xff]
      %v244 = vld [vmem:[%s196 + $0x104] sm:$0xff]
      %v245 = vld [vmem:[%s196 + $0x10c] sm:$0xff]
      %v246 = vld [vmem:[%s196 + $0x114] sm:$0xf]
      %v247 = vld [vmem:[%s196 + $0x118] sm:$0xff]
      %v248 = vld [vmem:[%s196 + $0x120] sm:$0xff]
      %v249 = vld [vmem:[%s196 + $0x128] sm:$0xff]
      %v250 = vld [vmem:[%s196 + $0x130] sm:$0xf]
      %v251 = vld [vmem:[%s196 + $0x134] sm:$0xff]
      %v252 = vld [vmem:[%s196 + $0x13c] sm:$0xff]
      %v253 = vld [vmem:[%s196 + $0x144] sm:$0xff]
      %v254 = vld [vmem:[%s196 + $0x14c] sm:$0xf]
      %v255 = vld [vmem:[%s196 + $0x150] sm:$0xff]
      %v256 = vld [vmem:[%s196 + $0x158] sm:$0xff]
      %v257 = vld [vmem:[%s196 + $0x160] sm:$0xff]
      %v258 = vld [vmem:[%s196 + $0x168] sm:$0xf]
      %v259 = vld [vmem:[%s196 + $0x16c] sm:$0xff]
      %v260 = vld [vmem:[%s196 + $0x174] sm:$0xff]
      %v261 = vld [vmem:[%s196 + $0x17c] sm:$0xff]
      %v262 = vld [vmem:[%s196 + $0x184] sm:$0xf]
      %v263 = vld [vmem:[%s196 + $0x188] sm:$0xff]
      %v264 = vld [vmem:[%s196 + $0x190] sm:$0xff]
      %v265 = vld [vmem:[%s196 + $0x198] sm:$0xff]
      %v266 = vld [vmem:[%s196 + $0x1a0] sm:$0xf]
      %v267 = vld [vmem:[%s196 + $0x1a4] sm:$0xff]
      %v268 = vld [vmem:[%s196 + $0x1ac] sm:$0xff]
      %v269 = vld [vmem:[%s196 + $0x1b4] sm:$0xff]
      %v270 = vld [vmem:[%s196 + $0x1bc] sm:$0xf]
      %v271 = vld [vmem:[%s1] sm:$0xff]
      %v272 = vld [vmem:[%s1 + $0x8] sm:$0xff]
      %v273 = vld [vmem:[%s1 + $0x10] sm:$0xff]
      %v274 = vld [vmem:[%s1 + $0x18] sm:$0xff]
      %v275 = vld [vmem:[%s1 + $0x20] sm:$0xff]
      %v276 = vld [vmem:[%s1 + $0x28] sm:$0xff]
      %v277 = vld [vmem:[%s1 + $0x30] sm:$0xff]
      %v278 = vld [vmem:[%s1 + $0x38] sm:$0xff]
      %v279 = vld [vmem:[%s1 + $0x40] sm:$0xff]
      %v280 = vld [vmem:[%s1 + $0x48] sm:$0xff]
      %v281 = vld [vmem:[%s1 + $0x50] sm:$0xff]
      %v282 = vld [vmem:[%s1 + $0x58] sm:$0xff]
      %v283 = vld [vmem:[%s1 + $0x60] sm:$0xff]
      %v284 = vld [vmem:[%s1 + $0x68] sm:$0xff]
      %v285 = vld [vmem:[%s1 + $0x70] sm:$0xff]
      %v286 = vld [vmem:[%s1 + $0x78] sm:$0xff]
      %v287 = vld [vmem:[%s1 + $0x80] sm:$0xff]
      %v288 = vld [vmem:[%s1 + $0x88] sm:$0xff]
      %v289 = vld [vmem:[%s1 + $0x90] sm:$0xff]
      %v290 = vld [vmem:[%s1 + $0x98] sm:$0xff]
      %v291 = vld [vmem:[%s1 + $0xa0] sm:$0xff]
      %v292 = vld [vmem:[%s1 + $0xa8] sm:$0xff]
      %v293 = vld [vmem:[%s1 + $0xb0] sm:$0xff]
      %v294 = vld [vmem:[%s1 + $0xb8] sm:$0xff]
      %v295 = vld [vmem:[%s1 + $0xc0] sm:$0xff]
      %v296 = vld [vmem:[%s1 + $0xc8] sm:$0xff]
      %v297 = vld [vmem:[%s1 + $0xd0] sm:$0xff]
      %v298 = vld [vmem:[%s1 + $0xd8] sm:$0xff]
      %v299 = vld [vmem:[%s1 + $0xe0] sm:$0xff]
      %v300 = vld [vmem:[%s1 + $0xe8] sm:$0xff]
      %v301 = vld [vmem:[%s1 + $0xf0] sm:$0xff]
      %v302 = vld [vmem:[%s1 + $0xf8] sm:$0xff]
      %v303 = vld [vmem:[%s1 + $0x100] sm:$0xff]
      %v304 = vld [vmem:[%s1 + $0x108] sm:$0xff]
      %v305 = vld [vmem:[%s1 + $0x110] sm:$0xff]
      %v306 = vld [vmem:[%s1 + $0x118] sm:$0xff]
      %v307 = vld [vmem:[%s1 + $0x120] sm:$0xff]
      %v308 = vld [vmem:[%s1 + $0x128] sm:$0xff]
      %v309 = vld [vmem:[%s1 + $0x130] sm:$0xff]
      %v310 = vld [vmem:[%s1 + $0x138] sm:$0xff]
      %v311 = vld [vmem:[%s1 + $0x140] sm:$0xff]
      %v312 = vld [vmem:[%s1 + $0x148] sm:$0xff]
      %v313 = vld [vmem:[%s1 + $0x150] sm:$0xff]
      %v314 = vld [vmem:[%s1 + $0x158] sm:$0xff]
      %v315 = vld [vmem:[%s1 + $0x160] sm:$0xff]
      %v316 = vld [vmem:[%s1 + $0x168] sm:$0xff]
      %v317 = vld [vmem:[%s1 + $0x170] sm:$0xff]
      %v318 = vld [vmem:[%s1 + $0x178] sm:$0xff]
      %v319 = vld [vmem:[%s1 + $0x180] sm:$0xff]
      %v320 = vld [vmem:[%s1 + $0x188] sm:$0xff]
      %v321 = vld [vmem:[%s1 + $0x190] sm:$0xff]
      %v322 = vld [vmem:[%s1 + $0x198] sm:$0xff]
      %v323 = vld [vmem:[%s1 + $0x1a0] sm:$0xff]
      %v324 = vld [vmem:[%s1 + $0x1a8] sm:$0xff]
      %v325 = vld [vmem:[%s1 + $0x1b0] sm:$0xff]
      %v326 = vld [vmem:[%s1 + $0x1b8] sm:$0xff]
      %v327 = vld [vmem:[%s1 + $0x1c0] sm:$0xff]
      %v328 = vld [vmem:[%s1 + $0x1c8] sm:$0xff]
      %v329 = vld [vmem:[%s1 + $0x1d0] sm:$0xff]
      %v330 = vld [vmem:[%s1 + $0x1d8] sm:$0xff]
      %v331 = vld [vmem:[%s1 + $0x1e0] sm:$0xff]
      %v332 = vld [vmem:[%s1 + $0x1e8] sm:$0xff]
      %v333 = vld [vmem:[%s1 + $0x1f0] sm:$0xff]
      %v334 = vld [vmem:[%s1 + $0x1f8] sm:$0xff]
      %v335 = vld [vmem:[%s1 + $0x200] sm:$0xff]
      %v336 = vld [vmem:[%s1 + $0x208] sm:$0xff]
      %v337 = vld [vmem:[%s1 + $0x210] sm:$0xff]
      %v338 = vld [vmem:[%s1 + $0x218] sm:$0xff]
      %v339 = vld [vmem:[%s1 + $0x220] sm:$0xff]
      %v340 = vld [vmem:[%s1 + $0x228] sm:$0xff]
      %v341 = vld [vmem:[%s1 + $0x230] sm:$0xff]
      %v342 = vld [vmem:[%s1 + $0x238] sm:$0xff]
      %v343 = vld [vmem:[%s1 + $0x240] sm:$0xff]
      %v344 = vld [vmem:[%s1 + $0x248] sm:$0xff]
      %v345 = vld [vmem:[%s1 + $0x250] sm:$0xff]
      %v346 = vld [vmem:[%s1 + $0x258] sm:$0xff]
      %v347 = vld [vmem:[%s1 + $0x260] sm:$0xff]
      %v348 = vld [vmem:[%s1 + $0x268] sm:$0xff]
      %v349 = vld [vmem:[%s1 + $0x270] sm:$0xff]
      %v350 = vld [vmem:[%s1 + $0x278] sm:$0xff]
      %v351 = vld [vmem:[%s1 + $0x280] sm:$0xff]
      %v352 = vld [vmem:[%s1 + $0x288] sm:$0xff]
      %v353 = vld [vmem:[%s1 + $0x290] sm:$0xff]
      %v354 = vld [vmem:[%s1 + $0x298] sm:$0xff]
      %v355 = vld [vmem:[%s1 + $0x2a0] sm:$0xff]
      %v356 = vld [vmem:[%s1 + $0x2a8] sm:$0xff]
      %v357 = vld [vmem:[%s1 + $0x2b0] sm:$0xff]
      %v358 = vld [vmem:[%s1 + $0x2b8] sm:$0xff]
      %v359 = vld [vmem:[%s1 + $0x2c0] sm:$0xff]
      %v360 = vld [vmem:[%s1 + $0x2c8] sm:$0xff]
      %v361 = vld [vmem:[%s1 + $0x2d0] sm:$0xff]
      %v362 = vld [vmem:[%s1 + $0x2d8] sm:$0xff]
      %v363 = vld [vmem:[%s1 + $0x2e0] sm:$0xff]
      %v364 = vld [vmem:[%s1 + $0x2e8] sm:$0xff]
      %v365 = vld [vmem:[%s1 + $0x2f0] sm:$0xff]
      %v366 = vld [vmem:[%s1 + $0x2f8] sm:$0xff]
      %v367 = vld [vmem:[%s1 + $0x300] sm:$0xff]
      %v368 = vld [vmem:[%s1 + $0x308] sm:$0xff]
      %v369 = vperm.slane %v205, 0
      %v370 = vperm.slane %v206, 0
      %v435 = vunpack.c.l.b16 %v207
      %v436 = vunpack.c.h.b16 %v207
      %v437 = vunpack.c.l.b16 %v208
      %v438 = vunpack.c.h.b16 %v208
      %v439 = vunpack.c.l.b16 %v209
      %v440 = vunpack.c.h.b16 %v209
      %v441 = vunpack.c.l.b16 %v210
      %v442 = vunpack.c.l.b16 %v211
      %v443 = vunpack.c.h.b16 %v211
      %v444 = vunpack.c.l.b16 %v212
      %v445 = vunpack.c.h.b16 %v212
      %v446 = vunpack.c.l.b16 %v213
      %v447 = vunpack.c.h.b16 %v213
      %v448 = vunpack.c.l.b16 %v214
      %v449 = vunpack.c.l.b16 %v215
      %v450 = vunpack.c.h.b16 %v215
      %v451 = vunpack.c.l.b16 %v216
      %v452 = vunpack.c.h.b16 %v216
      %v453 = vunpack.c.l.b16 %v217
      %v454 = vunpack.c.h.b16 %v217
      %v455 = vunpack.c.l.b16 %v218
      %v456 = vunpack.c.l.b16 %v219
      %v457 = vunpack.c.h.b16 %v219
      %v458 = vunpack.c.l.b16 %v220
      %v459 = vunpack.c.h.b16 %v220
      %v460 = vunpack.c.l.b16 %v221
      %v461 = vunpack.c.h.b16 %v221
      %v462 = vunpack.c.l.b16 %v222
      %v463 = vunpack.c.l.b16 %v223
      %v464 = vunpack.c.h.b16 %v223
      %v465 = vunpack.c.l.b16 %v224
      %v466 = vunpack.c.h.b16 %v224
      %v467 = vunpack.c.l.b16 %v225
      %v468 = vunpack.c.h.b16 %v225
      %v469 = vunpack.c.l.b16 %v226
      %v470 = vunpack.c.l.b16 %v227
      %v471 = vunpack.c.h.b16 %v227
      %v472 = vunpack.c.l.b16 %v228
      %v473 = vunpack.c.h.b16 %v228
      %v474 = vunpack.c.l.b16 %v229
      %v475 = vunpack.c.h.b16 %v229
      %v476 = vunpack.c.l.b16 %v230
      %v477 = vunpack.c.l.b16 %v231
      %v478 = vunpack.c.h.b16 %v231
      %v479 = vunpack.c.l.b16 %v232
      %v480 = vunpack.c.h.b16 %v232
      %v481 = vunpack.c.l.b16 %v233
      %v482 = vunpack.c.h.b16 %v233
      %v483 = vunpack.c.l.b16 %v234
      %v484 = vunpack.c.l.b16 %v235
      %v485 = vunpack.c.h.b16 %v235
      %v486 = vunpack.c.l.b16 %v236
      %v487 = vunpack.c.h.b16 %v236
      %v488 = vunpack.c.l.b16 %v237
      %v489 = vunpack.c.h.b16 %v237
      %v490 = vunpack.c.l.b16 %v238
      %v491 = vunpack.c.l.b16 %v239
      %v492 = vunpack.c.h.b16 %v239
      %v493 = vunpack.c.l.b16 %v240
      %v494 = vunpack.c.h.b16 %v240
      %v495 = vunpack.c.l.b16 %v241
      %v496 = vunpack.c.h.b16 %v241
      %v497 = vunpack.c.l.b16 %v242
      %v498 = vunpack.c.l.b16 %v243
      %v499 = vunpack.c.h.b16 %v243
      %v500 = vunpack.c.l.b16 %v244
      %v501 = vunpack.c.h.b16 %v244
      %v502 = vunpack.c.l.b16 %v245
      %v503 = vunpack.c.h.b16 %v245
      %v504 = vunpack.c.l.b16 %v246
      %v505 = vunpack.c.l.b16 %v247
      %v506 = vunpack.c.h.b16 %v247
      %v507 = vunpack.c.l.b16 %v248
      %v508 = vunpack.c.h.b16 %v248
      %v509 = vunpack.c.l.b16 %v249
      %v510 = vunpack.c.h.b16 %v249
      %v511 = vunpack.c.l.b16 %v250
      %v512 = vunpack.c.l.b16 %v251
      %v513 = vunpack.c.h.b16 %v251
      %v514 = vunpack.c.l.b16 %v252
      %v515 = vunpack.c.h.b16 %v252
      %v516 = vunpack.c.l.b16 %v253
      %v517 = vunpack.c.h.b16 %v253
      %v518 = vunpack.c.l.b16 %v254
      %v519 = vunpack.c.l.b16 %v255
      %v520 = vunpack.c.h.b16 %v255
      %v521 = vunpack.c.l.b16 %v256
      %v522 = vunpack.c.h.b16 %v256
      %v523 = vunpack.c.l.b16 %v257
      %v524 = vunpack.c.h.b16 %v257
      %v525 = vunpack.c.l.b16 %v258
      %v526 = vunpack.c.l.b16 %v259
      %v527 = vunpack.c.h.b16 %v259
      %v528 = vunpack.c.l.b16 %v260
      %v529 = vunpack.c.h.b16 %v260
      %v530 = vunpack.c.l.b16 %v261
      %v531 = vunpack.c.h.b16 %v261
      %v532 = vunpack.c.l.b16 %v262
      %v533 = vunpack.c.l.b16 %v263
      %v534 = vunpack.c.h.b16 %v263
      %v535 = vunpack.c.l.b16 %v264
      %v536 = vunpack.c.h.b16 %v264
      %v537 = vunpack.c.l.b16 %v265
      %v538 = vunpack.c.h.b16 %v265
      %v539 = vunpack.c.l.b16 %v266
      %v540 = vunpack.c.l.b16 %v267
      %v541 = vunpack.c.h.b16 %v267
      %v542 = vunpack.c.l.b16 %v268
      %v543 = vunpack.c.h.b16 %v268
      %v544 = vunpack.c.l.b16 %v269
      %v545 = vunpack.c.h.b16 %v269
      %v546 = vunpack.c.l.b16 %v270
      %v547 = vpack.c.b16 %v442, %v435
      %v548 = vpack.c.b16 %v443, %v436
      %v549 = vpack.c.b16 %v444, %v437
      %v550 = vpack.c.b16 %v445, %v438
      %v551 = vpack.c.b16 %v446, %v439
      %v552 = vpack.c.b16 %v447, %v440
      %v553 = vpack.c.b16 %v448, %v441
      %v554 = vpack.c.b16 %v456, %v449
      %v555 = vpack.c.b16 %v457, %v450
      %v556 = vpack.c.b16 %v458, %v451
      %v557 = vpack.c.b16 %v459, %v452
      %v558 = vpack.c.b16 %v460, %v453
      %v559 = vpack.c.b16 %v461, %v454
      %v560 = vpack.c.b16 %v462, %v455
      %v561 = vpack.c.b16 %v470, %v463
      %v562 = vpack.c.b16 %v471, %v464
      %v563 = vpack.c.b16 %v472, %v465
      %v564 = vpack.c.b16 %v473, %v466
      %v565 = vpack.c.b16 %v474, %v467
      %v566 = vpack.c.b16 %v475, %v468
      %v567 = vpack.c.b16 %v476, %v469
      %v568 = vpack.c.b16 %v484, %v477
      %v569 = vpack.c.b16 %v485, %v478
      %v570 = vpack.c.b16 %v486, %v479
      %v571 = vpack.c.b16 %v487, %v480
      %v572 = vpack.c.b16 %v488, %v481
      %v573 = vpack.c.b16 %v489, %v482
      %v574 = vpack.c.b16 %v490, %v483
      %v575 = vpack.c.b16 %v498, %v491
      %v576 = vpack.c.b16 %v499, %v492
      %v577 = vpack.c.b16 %v500, %v493
      %v578 = vpack.c.b16 %v501, %v494
      %v579 = vpack.c.b16 %v502, %v495
      %v580 = vpack.c.b16 %v503, %v496
      %v581 = vpack.c.b16 %v504, %v497
      %v582 = vpack.c.b16 %v512, %v505
      %v583 = vpack.c.b16 %v513, %v506
      %v584 = vpack.c.b16 %v514, %v507
      %v585 = vpack.c.b16 %v515, %v508
      %v586 = vpack.c.b16 %v516, %v509
      %v587 = vpack.c.b16 %v517, %v510
      %v588 = vpack.c.b16 %v518, %v511
      %v589 = vpack.c.b16 %v526, %v519
      %v590 = vpack.c.b16 %v527, %v520
      %v591 = vpack.c.b16 %v528, %v521
      %v592 = vpack.c.b16 %v529, %v522
      %v593 = vpack.c.b16 %v530, %v523
      %v594 = vpack.c.b16 %v531, %v524
      %v595 = vpack.c.b16 %v532, %v525
      %v596 = vpack.c.b16 %v540, %v533
      %v597 = vpack.c.b16 %v541, %v534
      %v598 = vpack.c.b16 %v542, %v535
      %v599 = vpack.c.b16 %v543, %v536
      %v600 = vpack.c.b16 %v544, %v537
      %v601 = vpack.c.b16 %v545, %v538
      %v602 = vpack.c.b16 %v546, %v539
      %v749 = vunpack.c.l.b16 %v271
      %v750 = vunpack.c.h.b16 %v271
      %v751 = vunpack.c.l.b16 %v272
      %v752 = vunpack.c.h.b16 %v272
      %v753 = vunpack.c.l.b16 %v273
      %v754 = vunpack.c.h.b16 %v273
      %v755 = vunpack.c.l.b16 %v274
      %v756 = vunpack.c.h.b16 %v274
      %v757 = vunpack.c.l.b16 %v275
      %v758 = vunpack.c.h.b16 %v275
      %v759 = vunpack.c.l.b16 %v276
      %v760 = vunpack.c.h.b16 %v276
      %v761 = vunpack.c.l.b16 %v277
      %v762 = vunpack.c.h.b16 %v277
      %v763 = vunpack.c.l.b16 %v278
      %v764 = vunpack.c.h.b16 %v278
      %v765 = vunpack.c.l.b16 %v279
      %v766 = vunpack.c.h.b16 %v279
      %v767 = vunpack.c.l.b16 %v280
      %v768 = vunpack.c.h.b16 %v280
      %v769 = vunpack.c.l.b16 %v281
      %v770 = vunpack.c.h.b16 %v281
      %v771 = vunpack.c.l.b16 %v282
      %v772 = vunpack.c.h.b16 %v282
      %v773 = vunpack.c.l.b16 %v283
      %v774 = vunpack.c.h.b16 %v283
      %v775 = vunpack.c.l.b16 %v284
      %v776 = vunpack.c.h.b16 %v284
      %v777 = vunpack.c.l.b16 %v285
      %v778 = vunpack.c.h.b16 %v285
      %v779 = vunpack.c.l.b16 %v286
      %v780 = vunpack.c.h.b16 %v286
      %v781 = vunpack.c.l.b16 %v287
      %v782 = vunpack.c.h.b16 %v287
      %v783 = vunpack.c.l.b16 %v288
      %v784 = vunpack.c.h.b16 %v288
      %v785 = vunpack.c.l.b16 %v289
      %v786 = vunpack.c.h.b16 %v289
      %v787 = vunpack.c.l.b16 %v290
      %v788 = vunpack.c.h.b16 %v290
      %v789 = vunpack.c.l.b16 %v291
      %v790 = vunpack.c.h.b16 %v291
      %v791 = vunpack.c.l.b16 %v292
      %v792 = vunpack.c.h.b16 %v292
      %v793 = vunpack.c.l.b16 %v293
      %v794 = vunpack.c.h.b16 %v293
      %v795 = vunpack.c.l.b16 %v294
      %v796 = vunpack.c.h.b16 %v294
      %v797 = vunpack.c.l.b16 %v295
      %v798 = vunpack.c.h.b16 %v295
      %v799 = vunpack.c.l.b16 %v296
      %v800 = vunpack.c.h.b16 %v296
      %v801 = vunpack.c.l.b16 %v297
      %v802 = vunpack.c.h.b16 %v297
      %v803 = vunpack.c.l.b16 %v298
      %v804 = vunpack.c.h.b16 %v298
      %v805 = vunpack.c.l.b16 %v299
      %v806 = vunpack.c.h.b16 %v299
      %v807 = vunpack.c.l.b16 %v300
      %v808 = vunpack.c.h.b16 %v300
      %v809 = vunpack.c.l.b16 %v301
      %v810 = vunpack.c.h.b16 %v301
      %v811 = vunpack.c.l.b16 %v302
      %v812 = vunpack.c.h.b16 %v302
      %v813 = vunpack.c.l.b16 %v303
      %v814 = vunpack.c.h.b16 %v303
      %v815 = vunpack.c.l.b16 %v304
      %v816 = vunpack.c.h.b16 %v304
      %v817 = vunpack.c.l.b16 %v305
      %v818 = vunpack.c.h.b16 %v305
      %v819 = vunpack.c.l.b16 %v306
      %v820 = vunpack.c.h.b16 %v306
      %v821 = vunpack.c.l.b16 %v307
      %v822 = vunpack.c.h.b16 %v307
      %v823 = vunpack.c.l.b16 %v308
      %v824 = vunpack.c.h.b16 %v308
      %v825 = vunpack.c.l.b16 %v309
      %v826 = vunpack.c.h.b16 %v309
      %v827 = vunpack.c.l.b16 %v310
      %v828 = vunpack.c.h.b16 %v310
      %v829 = vunpack.c.l.b16 %v311
      %v830 = vunpack.c.h.b16 %v311
      %v831 = vunpack.c.l.b16 %v312
      %v832 = vunpack.c.h.b16 %v312
      %v833 = vunpack.c.l.b16 %v313
      %v834 = vunpack.c.h.b16 %v313
      %v835 = vunpack.c.l.b16 %v314
      %v836 = vunpack.c.h.b16 %v314
      %v837 = vunpack.c.l.b16 %v315
      %v838 = vunpack.c.h.b16 %v315
      %v839 = vunpack.c.l.b16 %v316
      %v840 = vunpack.c.h.b16 %v316
      %v841 = vunpack.c.l.b16 %v317
      %v842 = vunpack.c.h.b16 %v317
      %v843 = vunpack.c.l.b16 %v318
      %v844 = vunpack.c.h.b16 %v318
      %v845 = vunpack.c.l.b16 %v319
      %v846 = vunpack.c.h.b16 %v319
      %v847 = vunpack.c.l.b16 %v320
      %v848 = vunpack.c.h.b16 %v320
      %v849 = vunpack.c.l.b16 %v321
      %v850 = vunpack.c.h.b16 %v321
      %v851 = vunpack.c.l.b16 %v322
      %v852 = vunpack.c.h.b16 %v322
      %v853 = vunpack.c.l.b16 %v323
      %v854 = vunpack.c.h.b16 %v323
      %v855 = vunpack.c.l.b16 %v324
      %v856 = vunpack.c.h.b16 %v324
      %v857 = vunpack.c.l.b16 %v325
      %v858 = vunpack.c.h.b16 %v325
      %v859 = vunpack.c.l.b16 %v326
      %v860 = vunpack.c.h.b16 %v326
      %v861 = vunpack.c.l.b16 %v327
      %v862 = vunpack.c.h.b16 %v327
      %v863 = vunpack.c.l.b16 %v328
      %v864 = vunpack.c.h.b16 %v328
      %v865 = vunpack.c.l.b16 %v329
      %v866 = vunpack.c.h.b16 %v329
      %v867 = vunpack.c.l.b16 %v330
      %v868 = vunpack.c.h.b16 %v330
      %v869 = vunpack.c.l.b16 %v331
      %v870 = vunpack.c.h.b16 %v331
      %v871 = vunpack.c.l.b16 %v332
      %v872 = vunpack.c.h.b16 %v332
      %v873 = vunpack.c.l.b16 %v333
      %v874 = vunpack.c.h.b16 %v333
      %v875 = vunpack.c.l.b16 %v334
      %v876 = vunpack.c.h.b16 %v334
      %v877 = vunpack.c.l.b16 %v335
      %v878 = vunpack.c.h.b16 %v335
      %v879 = vunpack.c.l.b16 %v336
      %v880 = vunpack.c.h.b16 %v336
      %v881 = vunpack.c.l.b16 %v337
      %v882 = vunpack.c.h.b16 %v337
      %v883 = vunpack.c.l.b16 %v338
      %v884 = vunpack.c.h.b16 %v338
      %v885 = vunpack.c.l.b16 %v339
      %v886 = vunpack.c.h.b16 %v339
      %v887 = vunpack.c.l.b16 %v340
      %v888 = vunpack.c.h.b16 %v340
      %v889 = vunpack.c.l.b16 %v341
      %v890 = vunpack.c.h.b16 %v341
      %v891 = vunpack.c.l.b16 %v342
      %v892 = vunpack.c.h.b16 %v342
      %v893 = vunpack.c.l.b16 %v343
      %v894 = vunpack.c.h.b16 %v343
      %v895 = vunpack.c.l.b16 %v344
      %v896 = vunpack.c.h.b16 %v344
      %v897 = vunpack.c.l.b16 %v345
      %v898 = vunpack.c.h.b16 %v345
      %v899 = vunpack.c.l.b16 %v346
      %v900 = vunpack.c.h.b16 %v346
      %v901 = vunpack.c.l.b16 %v347
      %v902 = vunpack.c.h.b16 %v347
      %v903 = vunpack.c.l.b16 %v348
      %v904 = vunpack.c.h.b16 %v348
      %v905 = vunpack.c.l.b16 %v349
      %v906 = vunpack.c.h.b16 %v349
      %v907 = vunpack.c.l.b16 %v350
      %v908 = vunpack.c.h.b16 %v350
      %v909 = vunpack.c.l.b16 %v351
      %v910 = vunpack.c.h.b16 %v351
      %v911 = vunpack.c.l.b16 %v352
      %v912 = vunpack.c.h.b16 %v352
      %v913 = vunpack.c.l.b16 %v353
      %v914 = vunpack.c.h.b16 %v353
      %v915 = vunpack.c.l.b16 %v354
      %v916 = vunpack.c.h.b16 %v354
      %v917 = vunpack.c.l.b16 %v355
      %v918 = vunpack.c.h.b16 %v355
      %v919 = vunpack.c.l.b16 %v356
      %v920 = vunpack.c.h.b16 %v356
      %v921 = vunpack.c.l.b16 %v357
      %v922 = vunpack.c.h.b16 %v357
      %v923 = vunpack.c.l.b16 %v358
      %v924 = vunpack.c.h.b16 %v358
      %v925 = vunpack.c.l.b16 %v359
      %v926 = vunpack.c.h.b16 %v359
      %v927 = vunpack.c.l.b16 %v360
      %v928 = vunpack.c.h.b16 %v360
      %v929 = vunpack.c.l.b16 %v361
      %v930 = vunpack.c.h.b16 %v361
      %v931 = vunpack.c.l.b16 %v362
      %v932 = vunpack.c.h.b16 %v362
      %v933 = vunpack.c.l.b16 %v363
      %v934 = vunpack.c.h.b16 %v363
      %v935 = vunpack.c.l.b16 %v364
      %v936 = vunpack.c.h.b16 %v364
      %v937 = vunpack.c.l.b16 %v365
      %v938 = vunpack.c.h.b16 %v365
      %v939 = vunpack.c.l.b16 %v366
      %v940 = vunpack.c.h.b16 %v366
      %v941 = vunpack.c.l.b16 %v367
      %v942 = vunpack.c.h.b16 %v367
      %v943 = vunpack.c.l.b16 %v368
      %v944 = vunpack.c.h.b16 %v368
      %v945 = vpack.c.b16 %v751, %v749
      %v946 = vpack.c.b16 %v752, %v750
      %v947 = vpack.c.b16 %v755, %v753
      %v948 = vpack.c.b16 %v756, %v754
      %v949 = vpack.c.b16 %v759, %v757
      %v950 = vpack.c.b16 %v760, %v758
      %v951 = vpack.c.b16 %v763, %v761
      %v952 = vpack.c.b16 %v764, %v762
      %v953 = vpack.c.b16 %v767, %v765
      %v954 = vpack.c.b16 %v768, %v766
      %v955 = vpack.c.b16 %v771, %v769
      %v956 = vpack.c.b16 %v772, %v770
      %v957 = vpack.c.b16 %v775, %v773
      %v958 = vpack.c.b16 %v776, %v774
      %v959 = vpack.c.b16 %v779, %v777
      %v960 = vpack.c.b16 %v780, %v778
      %v961 = vpack.c.b16 %v783, %v781
      %v962 = vpack.c.b16 %v784, %v782
      %v963 = vpack.c.b16 %v787, %v785
      %v964 = vpack.c.b16 %v788, %v786
      %v965 = vpack.c.b16 %v791, %v789
      %v966 = vpack.c.b16 %v792, %v790
      %v967 = vpack.c.b16 %v795, %v793
      %v968 = vpack.c.b16 %v796, %v794
      %v969 = vpack.c.b16 %v799, %v797
      %v970 = vpack.c.b16 %v800, %v798
      %v971 = vpack.c.b16 %v803, %v801
      %v972 = vpack.c.b16 %v804, %v802
      %v973 = vpack.c.b16 %v807, %v805
      %v974 = vpack.c.b16 %v808, %v806
      %v975 = vpack.c.b16 %v811, %v809
      %v976 = vpack.c.b16 %v812, %v810
      %v977 = vpack.c.b16 %v815, %v813
      %v978 = vpack.c.b16 %v816, %v814
      %v979 = vpack.c.b16 %v819, %v817
      %v980 = vpack.c.b16 %v820, %v818
      %v981 = vpack.c.b16 %v823, %v821
      %v982 = vpack.c.b16 %v824, %v822
      %v983 = vpack.c.b16 %v827, %v825
      %v984 = vpack.c.b16 %v828, %v826
      %v985 = vpack.c.b16 %v831, %v829
      %v986 = vpack.c.b16 %v832, %v830
      %v987 = vpack.c.b16 %v835, %v833
      %v988 = vpack.c.b16 %v836, %v834
      %v989 = vpack.c.b16 %v839, %v837
      %v990 = vpack.c.b16 %v840, %v838
      %v991 = vpack.c.b16 %v843, %v841
      %v992 = vpack.c.b16 %v844, %v842
      %v993 = vpack.c.b16 %v847, %v845
      %v994 = vpack.c.b16 %v848, %v846
      %v995 = vpack.c.b16 %v851, %v849
      %v996 = vpack.c.b16 %v852, %v850
      %v997 = vpack.c.b16 %v855, %v853
      %v998 = vpack.c.b16 %v856, %v854
      %v999 = vpack.c.b16 %v859, %v857
      %v1000 = vpack.c.b16 %v860, %v858
      %v1001 = vpack.c.b16 %v863, %v861
      %v1002 = vpack.c.b16 %v864, %v862
      %v1003 = vpack.c.b16 %v867, %v865
      %v1004 = vpack.c.b16 %v868, %v866
      %v1005 = vpack.c.b16 %v871, %v869
      %v1006 = vpack.c.b16 %v872, %v870
      %v1007 = vpack.c.b16 %v875, %v873
      %v1008 = vpack.c.b16 %v876, %v874
      %v1009 = vpack.c.b16 %v879, %v877
      %v1010 = vpack.c.b16 %v880, %v878
      %v1011 = vpack.c.b16 %v883, %v881
      %v1012 = vpack.c.b16 %v884, %v882
      %v1013 = vpack.c.b16 %v887, %v885
      %v1014 = vpack.c.b16 %v888, %v886
      %v1015 = vpack.c.b16 %v891, %v889
      %v1016 = vpack.c.b16 %v892, %v890
      %v1017 = vpack.c.b16 %v895, %v893
      %v1018 = vpack.c.b16 %v896, %v894
      %v1019 = vpack.c.b16 %v899, %v897
      %v1020 = vpack.c.b16 %v900, %v898
      %v1021 = vpack.c.b16 %v903, %v901
      %v1022 = vpack.c.b16 %v904, %v902
      %v1023 = vpack.c.b16 %v907, %v905
      %v1024 = vpack.c.b16 %v908, %v906
      %v1025 = vpack.c.b16 %v911, %v909
      %v1026 = vpack.c.b16 %v912, %v910
      %v1027 = vpack.c.b16 %v915, %v913
      %v1028 = vpack.c.b16 %v916, %v914
      %v1029 = vpack.c.b16 %v919, %v917
      %v1030 = vpack.c.b16 %v920, %v918
      %v1031 = vpack.c.b16 %v923, %v921
      %v1032 = vpack.c.b16 %v924, %v922
      %v1033 = vpack.c.b16 %v927, %v925
      %v1034 = vpack.c.b16 %v928, %v926
      %v1035 = vpack.c.b16 %v931, %v929
      %v1036 = vpack.c.b16 %v932, %v930
      %v1037 = vpack.c.b16 %v935, %v933
      %v1038 = vpack.c.b16 %v936, %v934
      %v1039 = vpack.c.b16 %v939, %v937
      %v1040 = vpack.c.b16 %v940, %v938
      %v1041 = vpack.c.b16 %v943, %v941
      %v1042 = vpack.c.b16 %v944, %v942
      %vm1141 = vcmask 130048
      %v1143 = vsel %vm1141, %v553, 0
      %v1146 = vsel %vm1141, %v560, 0
      %v1149 = vsel %vm1141, %v567, 0
      %v1152 = vsel %vm1141, %v574, 0
      %v1155 = vsel %vm1141, %v581, 0
      %v1158 = vsel %vm1141, %v588, 0
      %v1161 = vsel %vm1141, %v595, 0
      %v1164 = vsel %vm1141, %v602, 0
      %1166 = vmatpush.bf16.msra.mxu0 %v959
      %1167 = vmatpush.bf16.msra.mxu0 %v957
      %1168 = vmatpush.bf16.msra.mxu0 %v955
      %1169 = vmatpush.bf16.msra.mxu0 %v953
      %1170 = vmatpush.bf16.msra.mxu0 %v951
      %1171 = vmatpush.bf16.msra.mxu0 %v949
      %1172 = vmatpush.bf16.msra.mxu0 %v947
      %1173 = vmatpush.bf16.msra.mxu0 %v945
      %1174 = vmatmul.bf16.gmra.mxu0 %v547
      %v1175 = vpop.f32.mrf.mxu0
      %v1176 = vadd.f32 %v369, %v1175
      %v1177 = vpop.f32.mrf.mxu0
      %v1178 = vadd.f32 %v369, %v1177
      %1179 = vmatmul.bf16.gmra.mxu0 %v554
      %v1180 = vpop.f32.mrf.mxu0
      %v1181 = vadd.f32 %v369, %v1180
      %v1182 = vpop.f32.mrf.mxu0
      %v1183 = vadd.f32 %v369, %v1182
      %1184 = vmatmul.bf16.gmra.mxu0 %v561
      %v1185 = vpop.f32.mrf.mxu0
      %v1186 = vadd.f32 %v369, %v1185
      %v1187 = vpop.f32.mrf.mxu0
      %v1188 = vadd.f32 %v369, %v1187
      %1189 = vmatmul.bf16.gmra.mxu0 %v568
      %v1190 = vpop.f32.mrf.mxu0
      %v1191 = vadd.f32 %v369, %v1190
      %v1192 = vpop.f32.mrf.mxu0
      %v1193 = vadd.f32 %v369, %v1192
      %1194 = vmatmul.bf16.gmra.mxu0 %v575
      %v1195 = vpop.f32.mrf.mxu0
      %v1196 = vadd.f32 %v369, %v1195
      %v1197 = vpop.f32.mrf.mxu0
      %v1198 = vadd.f32 %v369, %v1197
      %1199 = vmatmul.bf16.gmra.mxu0 %v582
      %v1200 = vpop.f32.mrf.mxu0
      %v1201 = vadd.f32 %v369, %v1200
      %v1202 = vpop.f32.mrf.mxu0
      %v1203 = vadd.f32 %v369, %v1202
      %1204 = vmatmul.bf16.gmra.mxu0 %v589
      %v1205 = vpop.f32.mrf.mxu0
      %v1206 = vadd.f32 %v369, %v1205
      %v1207 = vpop.f32.mrf.mxu0
      %v1208 = vadd.f32 %v369, %v1207
      %1209 = vmatmul.bf16.gmra.mxu0 %v596
      %v1210 = vpop.f32.mrf.mxu0
      %v1211 = vadd.f32 %v369, %v1210
      %v1212 = vpop.f32.mrf.mxu0
      %v1213 = vadd.f32 %v369, %v1212
      %1214 = vdwg.mxu0
      %1215 = vmatpush.bf16.msra.mxu0 %v975
      %1216 = vmatpush.bf16.msra.mxu0 %v973
      %1217 = vmatpush.bf16.msra.mxu0 %v971
      %1218 = vmatpush.bf16.msra.mxu0 %v969
      %1219 = vmatpush.bf16.msra.mxu0 %v967
      %1220 = vmatpush.bf16.msra.mxu0 %v965
      %1221 = vmatpush.bf16.msra.mxu0 %v963
      %1222 = vmatpush.bf16.msra.mxu0 %v961
      %1223 = vmatmul.bf16.gmra.mxu0 %v548
      %v1224 = vpop.f32.mrf.mxu0
      %v1225 = vadd.f32 %v1176, %v1224
      %v1226 = vpop.f32.mrf.mxu0
      %v1227 = vadd.f32 %v1178, %v1226
      %1228 = vmatmul.bf16.gmra.mxu0 %v555
      %v1229 = vpop.f32.mrf.mxu0
      %v1230 = vadd.f32 %v1181, %v1229
      %v1231 = vpop.f32.mrf.mxu0
      %v1232 = vadd.f32 %v1183, %v1231
      %1233 = vmatmul.bf16.gmra.mxu0 %v562
      %v1234 = vpop.f32.mrf.mxu0
      %v1235 = vadd.f32 %v1186, %v1234
      %v1236 = vpop.f32.mrf.mxu0
      %v1237 = vadd.f32 %v1188, %v1236
      %1238 = vmatmul.bf16.gmra.mxu0 %v569
      %v1239 = vpop.f32.mrf.mxu0
      %v1240 = vadd.f32 %v1191, %v1239
      %v1241 = vpop.f32.mrf.mxu0
      %v1242 = vadd.f32 %v1193, %v1241
      %1243 = vmatmul.bf16.gmra.mxu0 %v576
      %v1244 = vpop.f32.mrf.mxu0
      %v1245 = vadd.f32 %v1196, %v1244
      %v1246 = vpop.f32.mrf.mxu0
      %v1247 = vadd.f32 %v1198, %v1246
      %1248 = vmatmul.bf16.gmra.mxu0 %v583
      %v1249 = vpop.f32.mrf.mxu0
      %v1250 = vadd.f32 %v1201, %v1249
      %v1251 = vpop.f32.mrf.mxu0
      %v1252 = vadd.f32 %v1203, %v1251
      %1253 = vmatmul.bf16.gmra.mxu0 %v590
      %v1254 = vpop.f32.mrf.mxu0
      %v1255 = vadd.f32 %v1206, %v1254
      %v1256 = vpop.f32.mrf.mxu0
      %v1257 = vadd.f32 %v1208, %v1256
      %1258 = vmatmul.bf16.gmra.mxu0 %v597
      %v1259 = vpop.f32.mrf.mxu0
      %v1260 = vadd.f32 %v1211, %v1259
      %v1261 = vpop.f32.mrf.mxu0
      %v1262 = vadd.f32 %v1213, %v1261
      %1263 = vdwg.mxu0
      %1264 = vmatpush.bf16.msra.mxu0 %v991
      %1265 = vmatpush.bf16.msra.mxu0 %v989
      %1266 = vmatpush.bf16.msra.mxu0 %v987
      %1267 = vmatpush.bf16.msra.mxu0 %v985
      %1268 = vmatpush.bf16.msra.mxu0 %v983
      %1269 = vmatpush.bf16.msra.mxu0 %v981
      %1270 = vmatpush.bf16.msra.mxu0 %v979
      %1271 = vmatpush.bf16.msra.mxu0 %v977
      %1272 = vmatmul.bf16.gmra.mxu0 %v549
      %v1273 = vpop.f32.mrf.mxu0
      %v1274 = vadd.f32 %v1225, %v1273
      %v1275 = vpop.f32.mrf.mxu0
      %v1276 = vadd.f32 %v1227, %v1275
      %1277 = vmatmul.bf16.gmra.mxu0 %v556
      %v1278 = vpop.f32.mrf.mxu0
      %v1279 = vadd.f32 %v1230, %v1278
      %v1280 = vpop.f32.mrf.mxu0
      %v1281 = vadd.f32 %v1232, %v1280
      %1282 = vmatmul.bf16.gmra.mxu0 %v563
      %v1283 = vpop.f32.mrf.mxu0
      %v1284 = vadd.f32 %v1235, %v1283
      %v1285 = vpop.f32.mrf.mxu0
      %v1286 = vadd.f32 %v1237, %v1285
      %1287 = vmatmul.bf16.gmra.mxu0 %v570
      %v1288 = vpop.f32.mrf.mxu0
      %v1289 = vadd.f32 %v1240, %v1288
      %v1290 = vpop.f32.mrf.mxu0
      %v1291 = vadd.f32 %v1242, %v1290
      %1292 = vmatmul.bf16.gmra.mxu0 %v577
      %v1293 = vpop.f32.mrf.mxu0
      %v1294 = vadd.f32 %v1245, %v1293
      %v1295 = vpop.f32.mrf.mxu0
      %v1296 = vadd.f32 %v1247, %v1295
      %1297 = vmatmul.bf16.gmra.mxu0 %v584
      %v1298 = vpop.f32.mrf.mxu0
      %v1299 = vadd.f32 %v1250, %v1298
      %v1300 = vpop.f32.mrf.mxu0
      %v1301 = vadd.f32 %v1252, %v1300
      %1302 = vmatmul.bf16.gmra.mxu0 %v591
      %v1303 = vpop.f32.mrf.mxu0
      %v1304 = vadd.f32 %v1255, %v1303
      %v1305 = vpop.f32.mrf.mxu0
      %v1306 = vadd.f32 %v1257, %v1305
      %1307 = vmatmul.bf16.gmra.mxu0 %v598
      %v1308 = vpop.f32.mrf.mxu0
      %v1309 = vadd.f32 %v1260, %v1308
      %v1310 = vpop.f32.mrf.mxu0
      %v1311 = vadd.f32 %v1262, %v1310
      %1312 = vdwg.mxu0
      %1313 = vmatpush.bf16.msra.mxu0 %v1007
      %1314 = vmatpush.bf16.msra.mxu0 %v1005
      %1315 = vmatpush.bf16.msra.mxu0 %v1003
      %1316 = vmatpush.bf16.msra.mxu0 %v1001
      %1317 = vmatpush.bf16.msra.mxu0 %v999
      %1318 = vmatpush.bf16.msra.mxu0 %v997
      %1319 = vmatpush.bf16.msra.mxu0 %v995
      %1320 = vmatpush.bf16.msra.mxu0 %v993
      %1321 = vmatmul.bf16.gmra.mxu0 %v550
      %v1322 = vpop.f32.mrf.mxu0
      %v1323 = vadd.f32 %v1274, %v1322
      %v1324 = vpop.f32.mrf.mxu0
      %v1325 = vadd.f32 %v1276, %v1324
      %1326 = vmatmul.bf16.gmra.mxu0 %v557
      %v1327 = vpop.f32.mrf.mxu0
      %v1328 = vadd.f32 %v1279, %v1327
      %v1329 = vpop.f32.mrf.mxu0
      %v1330 = vadd.f32 %v1281, %v1329
      %1331 = vmatmul.bf16.gmra.mxu0 %v564
      %v1332 = vpop.f32.mrf.mxu0
      %v1333 = vadd.f32 %v1284, %v1332
      %v1334 = vpop.f32.mrf.mxu0
      %v1335 = vadd.f32 %v1286, %v1334
      %1336 = vmatmul.bf16.gmra.mxu0 %v571
      %v1337 = vpop.f32.mrf.mxu0
      %v1338 = vadd.f32 %v1289, %v1337
      %v1339 = vpop.f32.mrf.mxu0
      %v1340 = vadd.f32 %v1291, %v1339
      %1341 = vmatmul.bf16.gmra.mxu0 %v578
      %v1342 = vpop.f32.mrf.mxu0
      %v1343 = vadd.f32 %v1294, %v1342
      %v1344 = vpop.f32.mrf.mxu0
      %v1345 = vadd.f32 %v1296, %v1344
      %1346 = vmatmul.bf16.gmra.mxu0 %v585
      %v1347 = vpop.f32.mrf.mxu0
      %v1348 = vadd.f32 %v1299, %v1347
      %v1349 = vpop.f32.mrf.mxu0
      %v1350 = vadd.f32 %v1301, %v1349
      %1351 = vmatmul.bf16.gmra.mxu0 %v592
      %v1352 = vpop.f32.mrf.mxu0
      %v1353 = vadd.f32 %v1304, %v1352
      %v1354 = vpop.f32.mrf.mxu0
      %v1355 = vadd.f32 %v1306, %v1354
      %1356 = vmatmul.bf16.gmra.mxu0 %v599
      %v1357 = vpop.f32.mrf.mxu0
      %v1358 = vadd.f32 %v1309, %v1357
      %v1359 = vpop.f32.mrf.mxu0
      %v1360 = vadd.f32 %v1311, %v1359
      %1361 = vdwg.mxu0
      %1362 = vmatpush.bf16.msra.mxu0 %v1023
      %1363 = vmatpush.bf16.msra.mxu0 %v1021
      %1364 = vmatpush.bf16.msra.mxu0 %v1019
      %1365 = vmatpush.bf16.msra.mxu0 %v1017
      %1366 = vmatpush.bf16.msra.mxu0 %v1015
      %1367 = vmatpush.bf16.msra.mxu0 %v1013
      %1368 = vmatpush.bf16.msra.mxu0 %v1011
      %1369 = vmatpush.bf16.msra.mxu0 %v1009
      %1370 = vmatmul.bf16.gmra.mxu0 %v551
      %v1371 = vpop.f32.mrf.mxu0
      %v1372 = vadd.f32 %v1323, %v1371
      %v1373 = vpop.f32.mrf.mxu0
      %v1374 = vadd.f32 %v1325, %v1373
      %1375 = vmatmul.bf16.gmra.mxu0 %v558
      %v1376 = vpop.f32.mrf.mxu0
      %v1377 = vadd.f32 %v1328, %v1376
      %v1378 = vpop.f32.mrf.mxu0
      %v1379 = vadd.f32 %v1330, %v1378
      %1380 = vmatmul.bf16.gmra.mxu0 %v565
      %v1381 = vpop.f32.mrf.mxu0
      %v1382 = vadd.f32 %v1333, %v1381
      %v1383 = vpop.f32.mrf.mxu0
      %v1384 = vadd.f32 %v1335, %v1383
      %1385 = vmatmul.bf16.gmra.mxu0 %v572
      %v1386 = vpop.f32.mrf.mxu0
      %v1387 = vadd.f32 %v1338, %v1386
      %v1388 = vpop.f32.mrf.mxu0
      %v1389 = vadd.f32 %v1340, %v1388
      %1390 = vmatmul.bf16.gmra.mxu0 %v579
      %v1391 = vpop.f32.mrf.mxu0
      %v1392 = vadd.f32 %v1343, %v1391
      %v1393 = vpop.f32.mrf.mxu0
      %v1394 = vadd.f32 %v1345, %v1393
      %1395 = vmatmul.bf16.gmra.mxu0 %v586
      %v1396 = vpop.f32.mrf.mxu0
      %v1397 = vadd.f32 %v1348, %v1396
      %v1398 = vpop.f32.mrf.mxu0
      %v1399 = vadd.f32 %v1350, %v1398
      %1400 = vmatmul.bf16.gmra.mxu0 %v593
      %v1401 = vpop.f32.mrf.mxu0
      %v1402 = vadd.f32 %v1353, %v1401
      %v1403 = vpop.f32.mrf.mxu0
      %v1404 = vadd.f32 %v1355, %v1403
      %1405 = vmatmul.bf16.gmra.mxu0 %v600
      %v1406 = vpop.f32.mrf.mxu0
      %v1407 = vadd.f32 %v1358, %v1406
      %v1408 = vpop.f32.mrf.mxu0
      %v1409 = vadd.f32 %v1360, %v1408
      %1410 = vdwg.mxu0
      %1411 = vmatpush.bf16.msra.mxu0 %v1039
      %1412 = vmatpush.bf16.msra.mxu0 %v1037
      %1413 = vmatpush.bf16.msra.mxu0 %v1035
      %1414 = vmatpush.bf16.msra.mxu0 %v1033
      %1415 = vmatpush.bf16.msra.mxu0 %v1031
      %1416 = vmatpush.bf16.msra.mxu0 %v1029
      %1417 = vmatpush.bf16.msra.mxu0 %v1027
      %1418 = vmatpush.bf16.msra.mxu0 %v1025
      %1419 = vmatmul.bf16.gmra.mxu0 %v552
      %v1420 = vpop.f32.mrf.mxu0
      %v1421 = vadd.f32 %v1372, %v1420
      %v1422 = vpop.f32.mrf.mxu0
      %v1423 = vadd.f32 %v1374, %v1422
      %1424 = vmatmul.bf16.gmra.mxu0 %v559
      %v1425 = vpop.f32.mrf.mxu0
      %v1426 = vadd.f32 %v1377, %v1425
      %v1427 = vpop.f32.mrf.mxu0
      %v1428 = vadd.f32 %v1379, %v1427
      %1429 = vmatmul.bf16.gmra.mxu0 %v566
      %v1430 = vpop.f32.mrf.mxu0
      %v1431 = vadd.f32 %v1382, %v1430
      %v1432 = vpop.f32.mrf.mxu0
      %v1433 = vadd.f32 %v1384, %v1432
      %1434 = vmatmul.bf16.gmra.mxu0 %v573
      %v1435 = vpop.f32.mrf.mxu0
      %v1436 = vadd.f32 %v1387, %v1435
      %v1437 = vpop.f32.mrf.mxu0
      %v1438 = vadd.f32 %v1389, %v1437
      %1439 = vmatmul.bf16.gmra.mxu0 %v580
      %v1440 = vpop.f32.mrf.mxu0
      %v1441 = vadd.f32 %v1392, %v1440
      %v1442 = vpop.f32.mrf.mxu0
      %v1443 = vadd.f32 %v1394, %v1442
      %1444 = vmatmul.bf16.gmra.mxu0 %v587
      %v1445 = vpop.f32.mrf.mxu0
      %v1446 = vadd.f32 %v1397, %v1445
      %v1447 = vpop.f32.mrf.mxu0
      %v1448 = vadd.f32 %v1399, %v1447
      %1449 = vmatmul.bf16.gmra.mxu0 %v594
      %v1450 = vpop.f32.mrf.mxu0
      %v1451 = vadd.f32 %v1402, %v1450
      %v1452 = vpop.f32.mrf.mxu0
      %v1453 = vadd.f32 %v1404, %v1452
      %1454 = vmatmul.bf16.gmra.mxu0 %v601
      %v1455 = vpop.f32.mrf.mxu0
      %v1456 = vadd.f32 %v1407, %v1455
      %v1457 = vpop.f32.mrf.mxu0
      %v1458 = vadd.f32 %v1409, %v1457
      %1459 = vdwg.mxu0
      %1460 = vmatpush.bf16.msra.mxu0 0
      %1461 = vmatpush.bf16.msra.mxu0 0
      %1462 = vmatpush.bf16.msra.mxu0 0
      %1463 = vmatpush.bf16.msra.mxu0 0
      %1464 = vmatpush.bf16.msra.mxu0 0
      %1465 = vmatpush.bf16.msra.mxu0 0
      %1466 = vmatpush.bf16.msra.mxu0 0
      %1467 = vmatpush.bf16.msra.mxu0 %v1041
      %1468 = vmatmul.bf16.gmra.mxu0 %v1143
      %v1469 = vpop.f32.mrf.mxu0
      %v1470 = vadd.f32 %v1421, %v1469
      %v1471 = vpop.f32.mrf.mxu0
      %v1472 = vadd.f32 %v1423, %v1471
      %1473 = vmatmul.bf16.gmra.mxu0 %v1146
      %v1474 = vpop.f32.mrf.mxu0
      %v1475 = vadd.f32 %v1426, %v1474
      %v1476 = vpop.f32.mrf.mxu0
      %v1477 = vadd.f32 %v1428, %v1476
      %1478 = vmatmul.bf16.gmra.mxu0 %v1149
      %v1479 = vpop.f32.mrf.mxu0
      %v1480 = vadd.f32 %v1431, %v1479
      %v1481 = vpop.f32.mrf.mxu0
      %v1482 = vadd.f32 %v1433, %v1481
      %1483 = vmatmul.bf16.gmra.mxu0 %v1152
      %v1484 = vpop.f32.mrf.mxu0
      %v1485 = vadd.f32 %v1436, %v1484
      %v1486 = vpop.f32.mrf.mxu0
      %v1487 = vadd.f32 %v1438, %v1486
      %1488 = vmatmul.bf16.gmra.mxu0 %v1155
      %v1489 = vpop.f32.mrf.mxu0
      %v1490 = vadd.f32 %v1441, %v1489
      %v1491 = vpop.f32.mrf.mxu0
      %v1492 = vadd.f32 %v1443, %v1491
      %1493 = vmatmul.bf16.gmra.mxu0 %v1158
      %v1494 = vpop.f32.mrf.mxu0
      %v1495 = vadd.f32 %v1446, %v1494
      %v1496 = vpop.f32.mrf.mxu0
      %v1497 = vadd.f32 %v1448, %v1496
      %1498 = vmatmul.bf16.gmra.mxu0 %v1161
      %v1499 = vpop.f32.mrf.mxu0
      %v1500 = vadd.f32 %v1451, %v1499
      %v1501 = vpop.f32.mrf.mxu0
      %v1502 = vadd.f32 %v1453, %v1501
      %1503 = vmatmul.bf16.gmra.mxu0 %v1164
      %v1504 = vpop.f32.mrf.mxu0
      %v1505 = vadd.f32 %v1456, %v1504
      %v1506 = vpop.f32.mrf.mxu0
      %v1507 = vadd.f32 %v1458, %v1506
      %1508 = vdwg.mxu0
      %1509 = vmatpush.bf16.msra.mxu0 %v960
      %1510 = vmatpush.bf16.msra.mxu0 %v958
      %1511 = vmatpush.bf16.msra.mxu0 %v956
      %1512 = vmatpush.bf16.msra.mxu0 %v954
      %1513 = vmatpush.bf16.msra.mxu0 %v952
      %1514 = vmatpush.bf16.msra.mxu0 %v950
      %1515 = vmatpush.bf16.msra.mxu0 %v948
      %1516 = vmatpush.bf16.msra.mxu0 %v946
      %1517 = vmatmul.bf16.gmra.mxu0 %v547
      %v1518 = vpop.f32.mrf.mxu0
      %v1519 = vadd.f32 %v370, %v1518
      %v1520 = vpop.f32.mrf.mxu0
      %v1521 = vadd.f32 %v370, %v1520
      %1522 = vmatmul.bf16.gmra.mxu0 %v554
      %v1523 = vpop.f32.mrf.mxu0
      %v1524 = vadd.f32 %v370, %v1523
      %v1525 = vpop.f32.mrf.mxu0
      %v1526 = vadd.f32 %v370, %v1525
      %1527 = vmatmul.bf16.gmra.mxu0 %v561
      %v1528 = vpop.f32.mrf.mxu0
      %v1529 = vadd.f32 %v370, %v1528
      %v1530 = vpop.f32.mrf.mxu0
      %v1531 = vadd.f32 %v370, %v1530
      %1532 = vmatmul.bf16.gmra.mxu0 %v568
      %v1533 = vpop.f32.mrf.mxu0
      %v1534 = vadd.f32 %v370, %v1533
      %v1535 = vpop.f32.mrf.mxu0
      %v1536 = vadd.f32 %v370, %v1535
      %1537 = vmatmul.bf16.gmra.mxu0 %v575
      %v1538 = vpop.f32.mrf.mxu0
      %v1539 = vadd.f32 %v370, %v1538
      %v1540 = vpop.f32.mrf.mxu0
      %v1541 = vadd.f32 %v370, %v1540
      %1542 = vmatmul.bf16.gmra.mxu0 %v582
      %v1543 = vpop.f32.mrf.mxu0
      %v1544 = vadd.f32 %v370, %v1543
      %v1545 = vpop.f32.mrf.mxu0
      %v1546 = vadd.f32 %v370, %v1545
      %1547 = vmatmul.bf16.gmra.mxu0 %v589
      %v1548 = vpop.f32.mrf.mxu0
      %v1549 = vadd.f32 %v370, %v1548
      %v1550 = vpop.f32.mrf.mxu0
      %v1551 = vadd.f32 %v370, %v1550
      %1552 = vmatmul.bf16.gmra.mxu0 %v596
      %v1553 = vpop.f32.mrf.mxu0
      %v1554 = vadd.f32 %v370, %v1553
      %v1555 = vpop.f32.mrf.mxu0
      %v1556 = vadd.f32 %v370, %v1555
      %1557 = vdwg.mxu0
      %1558 = vmatpush.bf16.msra.mxu0 %v976
      %1559 = vmatpush.bf16.msra.mxu0 %v974
      %1560 = vmatpush.bf16.msra.mxu0 %v972
      %1561 = vmatpush.bf16.msra.mxu0 %v970
      %1562 = vmatpush.bf16.msra.mxu0 %v968
      %1563 = vmatpush.bf16.msra.mxu0 %v966
      %1564 = vmatpush.bf16.msra.mxu0 %v964
      %1565 = vmatpush.bf16.msra.mxu0 %v962
      %1566 = vmatmul.bf16.gmra.mxu0 %v548
      %v1567 = vpop.f32.mrf.mxu0
      %v1568 = vadd.f32 %v1519, %v1567
      %v1569 = vpop.f32.mrf.mxu0
      %v1570 = vadd.f32 %v1521, %v1569
      %1571 = vmatmul.bf16.gmra.mxu0 %v555
      %v1572 = vpop.f32.mrf.mxu0
      %v1573 = vadd.f32 %v1524, %v1572
      %v1574 = vpop.f32.mrf.mxu0
      %v1575 = vadd.f32 %v1526, %v1574
      %1576 = vmatmul.bf16.gmra.mxu0 %v562
      %v1577 = vpop.f32.mrf.mxu0
      %v1578 = vadd.f32 %v1529, %v1577
      %v1579 = vpop.f32.mrf.mxu0
      %v1580 = vadd.f32 %v1531, %v1579
      %1581 = vmatmul.bf16.gmra.mxu0 %v569
      %v1582 = vpop.f32.mrf.mxu0
      %v1583 = vadd.f32 %v1534, %v1582
      %v1584 = vpop.f32.mrf.mxu0
      %v1585 = vadd.f32 %v1536, %v1584
      %1586 = vmatmul.bf16.gmra.mxu0 %v576
      %v1587 = vpop.f32.mrf.mxu0
      %v1588 = vadd.f32 %v1539, %v1587
      %v1589 = vpop.f32.mrf.mxu0
      %v1590 = vadd.f32 %v1541, %v1589
      %1591 = vmatmul.bf16.gmra.mxu0 %v583
      %v1592 = vpop.f32.mrf.mxu0
      %v1593 = vadd.f32 %v1544, %v1592
      %v1594 = vpop.f32.mrf.mxu0
      %v1595 = vadd.f32 %v1546, %v1594
      %1596 = vmatmul.bf16.gmra.mxu0 %v590
      %v1597 = vpop.f32.mrf.mxu0
      %v1598 = vadd.f32 %v1549, %v1597
      %v1599 = vpop.f32.mrf.mxu0
      %v1600 = vadd.f32 %v1551, %v1599
      %1601 = vmatmul.bf16.gmra.mxu0 %v597
      %v1602 = vpop.f32.mrf.mxu0
      %v1603 = vadd.f32 %v1554, %v1602
      %v1604 = vpop.f32.mrf.mxu0
      %v1605 = vadd.f32 %v1556, %v1604
      %1606 = vdwg.mxu0
      %1607 = vmatpush.bf16.msra.mxu0 %v992
      %1608 = vmatpush.bf16.msra.mxu0 %v990
      %1609 = vmatpush.bf16.msra.mxu0 %v988
      %1610 = vmatpush.bf16.msra.mxu0 %v986
      %1611 = vmatpush.bf16.msra.mxu0 %v984
      %1612 = vmatpush.bf16.msra.mxu0 %v982
      %1613 = vmatpush.bf16.msra.mxu0 %v980
      %1614 = vmatpush.bf16.msra.mxu0 %v978
      %1615 = vmatmul.bf16.gmra.mxu0 %v549
      %v1616 = vpop.f32.mrf.mxu0
      %v1617 = vadd.f32 %v1568, %v1616
      %v1618 = vpop.f32.mrf.mxu0
      %v1619 = vadd.f32 %v1570, %v1618
      %1620 = vmatmul.bf16.gmra.mxu0 %v556
      %v1621 = vpop.f32.mrf.mxu0
      %v1622 = vadd.f32 %v1573, %v1621
      %v1623 = vpop.f32.mrf.mxu0
      %v1624 = vadd.f32 %v1575, %v1623
      %1625 = vmatmul.bf16.gmra.mxu0 %v563
      %v1626 = vpop.f32.mrf.mxu0
      %v1627 = vadd.f32 %v1578, %v1626
      %v1628 = vpop.f32.mrf.mxu0
      %v1629 = vadd.f32 %v1580, %v1628
      %1630 = vmatmul.bf16.gmra.mxu0 %v570
      %v1631 = vpop.f32.mrf.mxu0
      %v1632 = vadd.f32 %v1583, %v1631
      %v1633 = vpop.f32.mrf.mxu0
      %v1634 = vadd.f32 %v1585, %v1633
      %1635 = vmatmul.bf16.gmra.mxu0 %v577
      %v1636 = vpop.f32.mrf.mxu0
      %v1637 = vadd.f32 %v1588, %v1636
      %v1638 = vpop.f32.mrf.mxu0
      %v1639 = vadd.f32 %v1590, %v1638
      %1640 = vmatmul.bf16.gmra.mxu0 %v584
      %v1641 = vpop.f32.mrf.mxu0
      %v1642 = vadd.f32 %v1593, %v1641
      %v1643 = vpop.f32.mrf.mxu0
      %v1644 = vadd.f32 %v1595, %v1643
      %1645 = vmatmul.bf16.gmra.mxu0 %v591
      %v1646 = vpop.f32.mrf.mxu0
      %v1647 = vadd.f32 %v1598, %v1646
      %v1648 = vpop.f32.mrf.mxu0
      %v1649 = vadd.f32 %v1600, %v1648
      %1650 = vmatmul.bf16.gmra.mxu0 %v598
      %v1651 = vpop.f32.mrf.mxu0
      %v1652 = vadd.f32 %v1603, %v1651
      %v1653 = vpop.f32.mrf.mxu0
      %v1654 = vadd.f32 %v1605, %v1653
      %1655 = vdwg.mxu0
      %1656 = vmatpush.bf16.msra.mxu0 %v1008
      %1657 = vmatpush.bf16.msra.mxu0 %v1006
      %1658 = vmatpush.bf16.msra.mxu0 %v1004
      %1659 = vmatpush.bf16.msra.mxu0 %v1002
      %1660 = vmatpush.bf16.msra.mxu0 %v1000
      %1661 = vmatpush.bf16.msra.mxu0 %v998
      %1662 = vmatpush.bf16.msra.mxu0 %v996
      %1663 = vmatpush.bf16.msra.mxu0 %v994
      %1664 = vmatmul.bf16.gmra.mxu0 %v550
      %v1665 = vpop.f32.mrf.mxu0
      %v1666 = vadd.f32 %v1617, %v1665
      %v1667 = vpop.f32.mrf.mxu0
      %v1668 = vadd.f32 %v1619, %v1667
      %1669 = vmatmul.bf16.gmra.mxu0 %v557
      %v1670 = vpop.f32.mrf.mxu0
      %v1671 = vadd.f32 %v1622, %v1670
      %v1672 = vpop.f32.mrf.mxu0
      %v1673 = vadd.f32 %v1624, %v1672
      %1674 = vmatmul.bf16.gmra.mxu0 %v564
      %v1675 = vpop.f32.mrf.mxu0
      %v1676 = vadd.f32 %v1627, %v1675
      %v1677 = vpop.f32.mrf.mxu0
      %v1678 = vadd.f32 %v1629, %v1677
      %1679 = vmatmul.bf16.gmra.mxu0 %v571
      %v1680 = vpop.f32.mrf.mxu0
      %v1681 = vadd.f32 %v1632, %v1680
      %v1682 = vpop.f32.mrf.mxu0
      %v1683 = vadd.f32 %v1634, %v1682
      %1684 = vmatmul.bf16.gmra.mxu0 %v578
      %v1685 = vpop.f32.mrf.mxu0
      %v1686 = vadd.f32 %v1637, %v1685
      %v1687 = vpop.f32.mrf.mxu0
      %v1688 = vadd.f32 %v1639, %v1687
      %1689 = vmatmul.bf16.gmra.mxu0 %v585
      %v1690 = vpop.f32.mrf.mxu0
      %v1691 = vadd.f32 %v1642, %v1690
      %v1692 = vpop.f32.mrf.mxu0
      %v1693 = vadd.f32 %v1644, %v1692
      %1694 = vmatmul.bf16.gmra.mxu0 %v592
      %v1695 = vpop.f32.mrf.mxu0
      %v1696 = vadd.f32 %v1647, %v1695
      %v1697 = vpop.f32.mrf.mxu0
      %v1698 = vadd.f32 %v1649, %v1697
      %1699 = vmatmul.bf16.gmra.mxu0 %v599
      %v1700 = vpop.f32.mrf.mxu0
      %v1701 = vadd.f32 %v1652, %v1700
      %v1702 = vpop.f32.mrf.mxu0
      %v1703 = vadd.f32 %v1654, %v1702
      %1704 = vdwg.mxu0
      %1705 = vmatpush.bf16.msra.mxu0 %v1024
      %1706 = vmatpush.bf16.msra.mxu0 %v1022
      %1707 = vmatpush.bf16.msra.mxu0 %v1020
      %1708 = vmatpush.bf16.msra.mxu0 %v1018
      %1709 = vmatpush.bf16.msra.mxu0 %v1016
      %1710 = vmatpush.bf16.msra.mxu0 %v1014
      %1711 = vmatpush.bf16.msra.mxu0 %v1012
      %1712 = vmatpush.bf16.msra.mxu0 %v1010
      %1713 = vmatmul.bf16.gmra.mxu0 %v551
      %v1714 = vpop.f32.mrf.mxu0
      %v1715 = vadd.f32 %v1666, %v1714
      %v1716 = vpop.f32.mrf.mxu0
      %v1717 = vadd.f32 %v1668, %v1716
      %1718 = vmatmul.bf16.gmra.mxu0 %v558
      %v1719 = vpop.f32.mrf.mxu0
      %v1720 = vadd.f32 %v1671, %v1719
      %v1721 = vpop.f32.mrf.mxu0
      %v1722 = vadd.f32 %v1673, %v1721
      %1723 = vmatmul.bf16.gmra.mxu0 %v565
      %v1724 = vpop.f32.mrf.mxu0
      %v1725 = vadd.f32 %v1676, %v1724
      %v1726 = vpop.f32.mrf.mxu0
      %v1727 = vadd.f32 %v1678, %v1726
      %1728 = vmatmul.bf16.gmra.mxu0 %v572
      %v1729 = vpop.f32.mrf.mxu0
      %v1730 = vadd.f32 %v1681, %v1729
      %v1731 = vpop.f32.mrf.mxu0
      %v1732 = vadd.f32 %v1683, %v1731
      %1733 = vmatmul.bf16.gmra.mxu0 %v579
      %v1734 = vpop.f32.mrf.mxu0
      %v1735 = vadd.f32 %v1686, %v1734
      %v1736 = vpop.f32.mrf.mxu0
      %v1737 = vadd.f32 %v1688, %v1736
      %1738 = vmatmul.bf16.gmra.mxu0 %v586
      %v1739 = vpop.f32.mrf.mxu0
      %v1740 = vadd.f32 %v1691, %v1739
      %v1741 = vpop.f32.mrf.mxu0
      %v1742 = vadd.f32 %v1693, %v1741
      %1743 = vmatmul.bf16.gmra.mxu0 %v593
      %v1744 = vpop.f32.mrf.mxu0
      %v1745 = vadd.f32 %v1696, %v1744
      %v1746 = vpop.f32.mrf.mxu0
      %v1747 = vadd.f32 %v1698, %v1746
      %1748 = vmatmul.bf16.gmra.mxu0 %v600
      %v1749 = vpop.f32.mrf.mxu0
      %v1750 = vadd.f32 %v1701, %v1749
      %v1751 = vpop.f32.mrf.mxu0
      %v1752 = vadd.f32 %v1703, %v1751
      %1753 = vdwg.mxu0
      %1754 = vmatpush.bf16.msra.mxu0 %v1040
      %1755 = vmatpush.bf16.msra.mxu0 %v1038
      %1756 = vmatpush.bf16.msra.mxu0 %v1036
      %1757 = vmatpush.bf16.msra.mxu0 %v1034
      %1758 = vmatpush.bf16.msra.mxu0 %v1032
      %1759 = vmatpush.bf16.msra.mxu0 %v1030
      %1760 = vmatpush.bf16.msra.mxu0 %v1028
      %1761 = vmatpush.bf16.msra.mxu0 %v1026
      %1762 = vmatmul.bf16.gmra.mxu0 %v552
      %v1763 = vpop.f32.mrf.mxu0
      %v1764 = vadd.f32 %v1715, %v1763
      %v1765 = vpop.f32.mrf.mxu0
      %v1766 = vadd.f32 %v1717, %v1765
      %1767 = vmatmul.bf16.gmra.mxu0 %v559
      %v1768 = vpop.f32.mrf.mxu0
      %v1769 = vadd.f32 %v1720, %v1768
      %v1770 = vpop.f32.mrf.mxu0
      %v1771 = vadd.f32 %v1722, %v1770
      %1772 = vmatmul.bf16.gmra.mxu0 %v566
      %v1773 = vpop.f32.mrf.mxu0
      %v1774 = vadd.f32 %v1725, %v1773
      %v1775 = vpop.f32.mrf.mxu0
      %v1776 = vadd.f32 %v1727, %v1775
      %1777 = vmatmul.bf16.gmra.mxu0 %v573
      %v1778 = vpop.f32.mrf.mxu0
      %v1779 = vadd.f32 %v1730, %v1778
      %v1780 = vpop.f32.mrf.mxu0
      %v1781 = vadd.f32 %v1732, %v1780
      %1782 = vmatmul.bf16.gmra.mxu0 %v580
      %v1783 = vpop.f32.mrf.mxu0
      %v1784 = vadd.f32 %v1735, %v1783
      %v1785 = vpop.f32.mrf.mxu0
      %v1786 = vadd.f32 %v1737, %v1785
      %1787 = vmatmul.bf16.gmra.mxu0 %v587
      %v1788 = vpop.f32.mrf.mxu0
      %v1789 = vadd.f32 %v1740, %v1788
      %v1790 = vpop.f32.mrf.mxu0
      %v1791 = vadd.f32 %v1742, %v1790
      %1792 = vmatmul.bf16.gmra.mxu0 %v594
      %v1793 = vpop.f32.mrf.mxu0
      %v1794 = vadd.f32 %v1745, %v1793
      %v1795 = vpop.f32.mrf.mxu0
      %v1796 = vadd.f32 %v1747, %v1795
      %1797 = vmatmul.bf16.gmra.mxu0 %v601
      %v1798 = vpop.f32.mrf.mxu0
      %v1799 = vadd.f32 %v1750, %v1798
      %v1800 = vpop.f32.mrf.mxu0
      %v1801 = vadd.f32 %v1752, %v1800
      %1802 = vdwg.mxu0
      %1803 = vmatpush.bf16.msra.mxu0 0
      %1804 = vmatpush.bf16.msra.mxu0 0
      %1805 = vmatpush.bf16.msra.mxu0 0
      %1806 = vmatpush.bf16.msra.mxu0 0
      %1807 = vmatpush.bf16.msra.mxu0 0
      %1808 = vmatpush.bf16.msra.mxu0 0
      %1809 = vmatpush.bf16.msra.mxu0 0
      %1810 = vmatpush.bf16.msra.mxu0 %v1042
      %1811 = vmatmul.bf16.gmra.mxu0 %v1143
      %v1812 = vpop.f32.mrf.mxu0
      %v1813 = vadd.f32 %v1764, %v1812
      %v1814 = vpop.f32.mrf.mxu0
      %v1815 = vadd.f32 %v1766, %v1814
      %1816 = vmatmul.bf16.gmra.mxu0 %v1146
      %v1817 = vpop.f32.mrf.mxu0
      %v1818 = vadd.f32 %v1769, %v1817
      %v1819 = vpop.f32.mrf.mxu0
      %v1820 = vadd.f32 %v1771, %v1819
      %1821 = vmatmul.bf16.gmra.mxu0 %v1149
      %v1822 = vpop.f32.mrf.mxu0
      %v1823 = vadd.f32 %v1774, %v1822
      %v1824 = vpop.f32.mrf.mxu0
      %v1825 = vadd.f32 %v1776, %v1824
      %1826 = vmatmul.bf16.gmra.mxu0 %v1152
      %v1827 = vpop.f32.mrf.mxu0
      %v1828 = vadd.f32 %v1779, %v1827
      %v1829 = vpop.f32.mrf.mxu0
      %v1830 = vadd.f32 %v1781, %v1829
      %1831 = vmatmul.bf16.gmra.mxu0 %v1155
      %v1832 = vpop.f32.mrf.mxu0
      %v1833 = vadd.f32 %v1784, %v1832
      %v1834 = vpop.f32.mrf.mxu0
      %v1835 = vadd.f32 %v1786, %v1834
      %1836 = vmatmul.bf16.gmra.mxu0 %v1158
      %v1837 = vpop.f32.mrf.mxu0
      %v1838 = vadd.f32 %v1789, %v1837
      %v1839 = vpop.f32.mrf.mxu0
      %v1840 = vadd.f32 %v1791, %v1839
      %1841 = vmatmul.bf16.gmra.mxu0 %v1161
      %v1842 = vpop.f32.mrf.mxu0
      %v1843 = vadd.f32 %v1794, %v1842
      %v1844 = vpop.f32.mrf.mxu0
      %v1845 = vadd.f32 %v1796, %v1844
      %1846 = vmatmul.bf16.gmra.mxu0 %v1164
      %v1847 = vpop.f32.mrf.mxu0
      %v1848 = vadd.f32 %v1799, %v1847
      %v1849 = vpop.f32.mrf.mxu0
      %v1850 = vadd.f32 %v1801, %v1849
      %1851 = vdwg.mxu0
      %v1852 = vmax.f32 %v1470, 0.0
      %v1853 = vmax.f32 %v1813, 0.0
      %v1854 = vmax.f32 %v1472, 0.0
      %v1855 = vmax.f32 %v1815, 0.0
      %v1856 = vmax.f32 %v1475, 0.0
      %v1857 = vmax.f32 %v1818, 0.0
      %v1858 = vmax.f32 %v1477, 0.0
      %v1859 = vmax.f32 %v1820, 0.0
      %v1860 = vmax.f32 %v1480, 0.0
      %v1861 = vmax.f32 %v1823, 0.0
      %v1862 = vmax.f32 %v1482, 0.0
      %v1863 = vmax.f32 %v1825, 0.0
      %v1864 = vmax.f32 %v1485, 0.0
      %v1865 = vmax.f32 %v1828, 0.0
      %v1866 = vmax.f32 %v1487, 0.0
      %v1867 = vmax.f32 %v1830, 0.0
      %v1868 = vmax.f32 %v1490, 0.0
      %v1869 = vmax.f32 %v1833, 0.0
      %v1870 = vmax.f32 %v1492, 0.0
      %v1871 = vmax.f32 %v1835, 0.0
      %v1872 = vmax.f32 %v1495, 0.0
      %v1873 = vmax.f32 %v1838, 0.0
      %v1874 = vmax.f32 %v1497, 0.0
      %v1875 = vmax.f32 %v1840, 0.0
      %v1876 = vmax.f32 %v1500, 0.0
      %v1877 = vmax.f32 %v1843, 0.0
      %v1878 = vmax.f32 %v1502, 0.0
      %v1879 = vmax.f32 %v1845, 0.0
      %v1880 = vmax.f32 %v1505, 0.0
      %v1881 = vmax.f32 %v1848, 0.0
      %v1882 = vmax.f32 %v1507, 0.0
      %v1883 = vmax.f32 %v1850, 0.0
      %v1884 = vld [vmem:[%s2] sm:$0xf]
      %v1885 = vld [vmem:[%s2 + $0x4] sm:$0xf]
      %v1886 = vld [vmem:[%s2 + $0x8] sm:$0xf]
      %v1887 = vld [vmem:[%s2 + $0xc] sm:$0xf]
      %v1888 = vld [vmem:[%s2 + $0x10] sm:$0xf]
      %v1889 = vld [vmem:[%s2 + $0x14] sm:$0xf]
      %v1890 = vld [vmem:[%s2 + $0x18] sm:$0xf]
      %v1891 = vld [vmem:[%s2 + $0x1c] sm:$0xf]
      %v1892 = vld [vmem:[%s2 + $0x20] sm:$0xf]
      %v1893 = vld [vmem:[%s2 + $0x24] sm:$0xf]
      %v1894 = vld [vmem:[%s2 + $0x28] sm:$0xf]
      %v1895 = vld [vmem:[%s2 + $0x2c] sm:$0xf]
      %v1896 = vld [vmem:[%s2 + $0x30] sm:$0xf]
      %v1897 = vld [vmem:[%s2 + $0x34] sm:$0xf]
      %v1898 = vld [vmem:[%s2 + $0x38] sm:$0xf]
      %v1899 = vld [vmem:[%s2 + $0x3c] sm:$0xf]
      %v1900 = vld [vmem:[%s2 + $0x40] sm:$0xf]
      %v1901 = vld [vmem:[%s2 + $0x44] sm:$0xf]
      %v1902 = vld [vmem:[%s2 + $0x48] sm:$0xf]
      %v1903 = vld [vmem:[%s2 + $0x4c] sm:$0xf]
      %v1904 = vld [vmem:[%s2 + $0x50] sm:$0xf]
      %v1905 = vld [vmem:[%s2 + $0x54] sm:$0xf]
      %v1906 = vld [vmem:[%s2 + $0x58] sm:$0xf]
      %v1907 = vld [vmem:[%s2 + $0x5c] sm:$0xf]
      %v1908 = vld [vmem:[%s2 + $0x60] sm:$0xf]
      %v1909 = vld [vmem:[%s2 + $0x64] sm:$0xf]
      %v1910 = vld [vmem:[%s2 + $0x68] sm:$0xf]
      %v1911 = vld [vmem:[%s2 + $0x6c] sm:$0xf]
      %v1912 = vld [vmem:[%s2 + $0x70] sm:$0xf]
      %v1913 = vld [vmem:[%s2 + $0x74] sm:$0xf]
      %v1914 = vld [vmem:[%s2 + $0x78] sm:$0xf]
      %v1915 = vld [vmem:[%s2 + $0x7c] sm:$0xf]
      %v1916 = vpack.c.bf16 %v1854, %v1852
      %v1917 = vpack.c.bf16 %v1855, %v1853
      %v1918 = vpack.c.bf16 %v1858, %v1856
      %v1919 = vpack.c.bf16 %v1859, %v1857
      %v1920 = vpack.c.bf16 %v1862, %v1860
      %v1921 = vpack.c.bf16 %v1863, %v1861
      %v1922 = vpack.c.bf16 %v1866, %v1864
      %v1923 = vpack.c.bf16 %v1867, %v1865
      %v1924 = vpack.c.bf16 %v1870, %v1868
      %v1925 = vpack.c.bf16 %v1871, %v1869
      %v1926 = vpack.c.bf16 %v1874, %v1872
      %v1927 = vpack.c.bf16 %v1875, %v1873
      %v1928 = vpack.c.bf16 %v1878, %v1876
      %v1929 = vpack.c.bf16 %v1879, %v1877
      %v1930 = vpack.c.bf16 %v1882, %v1880
      %v1931 = vpack.c.bf16 %v1883, %v1881
      %v1932 = vperm.slane %v205, 1
      %v1965 = vunpack.c.l.b16 %v1884
      %v1966 = vunpack.c.l.b16 %v1885
      %v1967 = vunpack.c.l.b16 %v1886
      %v1968 = vunpack.c.l.b16 %v1887
      %v1969 = vunpack.c.l.b16 %v1888
      %v1970 = vunpack.c.l.b16 %v1889
      %v1971 = vunpack.c.l.b16 %v1890
      %v1972 = vunpack.c.l.b16 %v1891
      %v1973 = vunpack.c.l.b16 %v1892
      %v1974 = vunpack.c.l.b16 %v1893
      %v1975 = vunpack.c.l.b16 %v1894
      %v1976 = vunpack.c.l.b16 %v1895
      %v1977 = vunpack.c.l.b16 %v1896
      %v1978 = vunpack.c.l.b16 %v1897
      %v1979 = vunpack.c.l.b16 %v1898
      %v1980 = vunpack.c.l.b16 %v1899
      %v1981 = vunpack.c.l.b16 %v1900
      %v1982 = vunpack.c.l.b16 %v1901
      %v1983 = vunpack.c.l.b16 %v1902
      %v1984 = vunpack.c.l.b16 %v1903
      %v1985 = vunpack.c.l.b16 %v1904
      %v1986 = vunpack.c.l.b16 %v1905
      %v1987 = vunpack.c.l.b16 %v1906
      %v1988 = vunpack.c.l.b16 %v1907
      %v1989 = vunpack.c.l.b16 %v1908
      %v1990 = vunpack.c.l.b16 %v1909
      %v1991 = vunpack.c.l.b16 %v1910
      %v1992 = vunpack.c.l.b16 %v1911
      %v1993 = vunpack.c.l.b16 %v1912
      %v1994 = vunpack.c.l.b16 %v1913
      %v1995 = vunpack.c.l.b16 %v1914
      %v1996 = vunpack.c.l.b16 %v1915
      %v1997 = vpack.c.b16 %v1966, %v1965
      %v1998 = vpack.c.b16 %v1968, %v1967
      %v1999 = vpack.c.b16 %v1970, %v1969
      %v2000 = vpack.c.b16 %v1972, %v1971
      %v2001 = vpack.c.b16 %v1974, %v1973
      %v2002 = vpack.c.b16 %v1976, %v1975
      %v2003 = vpack.c.b16 %v1978, %v1977
      %v2004 = vpack.c.b16 %v1980, %v1979
      %v2005 = vpack.c.b16 %v1982, %v1981
      %v2006 = vpack.c.b16 %v1984, %v1983
      %v2007 = vpack.c.b16 %v1986, %v1985
      %v2008 = vpack.c.b16 %v1988, %v1987
      %v2009 = vpack.c.b16 %v1990, %v1989
      %v2010 = vpack.c.b16 %v1992, %v1991
      %v2011 = vpack.c.b16 %v1994, %v1993
      %v2012 = vpack.c.b16 %v1996, %v1995
      %2029 = vmatpush.bf16.msra.mxu0 %v2004
      %2030 = vmatpush.bf16.msra.mxu0 %v2003
      %2031 = vmatpush.bf16.msra.mxu0 %v2002
      %2032 = vmatpush.bf16.msra.mxu0 %v2001
      %2033 = vmatpush.bf16.msra.mxu0 %v2000
      %2034 = vmatpush.bf16.msra.mxu0 %v1999
      %2035 = vmatpush.bf16.msra.mxu0 %v1998
      %2036 = vmatpush.bf16.msra.mxu0 %v1997
      %2037 = vmatmul.bf16.gmra.mxu0 %v1916
      %v2038 = vpop.f32.mrf.mxu0
      %v2039 = vadd.f32 %v1932, %v2038
      %v2040 = vpop.f32.mrf.mxu0
      %v2041 = vadd.f32 %v1932, %v2040
      %2042 = vmatmul.bf16.gmra.mxu0 %v1918
      %v2043 = vpop.f32.mrf.mxu0
      %v2044 = vadd.f32 %v1932, %v2043
      %v2045 = vpop.f32.mrf.mxu0
      %v2046 = vadd.f32 %v1932, %v2045
      %2047 = vmatmul.bf16.gmra.mxu0 %v1920
      %v2048 = vpop.f32.mrf.mxu0
      %v2049 = vadd.f32 %v1932, %v2048
      %v2050 = vpop.f32.mrf.mxu0
      %v2051 = vadd.f32 %v1932, %v2050
      %2052 = vmatmul.bf16.gmra.mxu0 %v1922
      %v2053 = vpop.f32.mrf.mxu0
      %v2054 = vadd.f32 %v1932, %v2053
      %v2055 = vpop.f32.mrf.mxu0
      %v2056 = vadd.f32 %v1932, %v2055
      %2057 = vmatmul.bf16.gmra.mxu0 %v1924
      %v2058 = vpop.f32.mrf.mxu0
      %v2059 = vadd.f32 %v1932, %v2058
      %v2060 = vpop.f32.mrf.mxu0
      %v2061 = vadd.f32 %v1932, %v2060
      %2062 = vmatmul.bf16.gmra.mxu0 %v1926
      %v2063 = vpop.f32.mrf.mxu0
      %v2064 = vadd.f32 %v1932, %v2063
      %v2065 = vpop.f32.mrf.mxu0
      %v2066 = vadd.f32 %v1932, %v2065
      %2067 = vmatmul.bf16.gmra.mxu0 %v1928
      %v2068 = vpop.f32.mrf.mxu0
      %v2069 = vadd.f32 %v1932, %v2068
      %v2070 = vpop.f32.mrf.mxu0
      %v2071 = vadd.f32 %v1932, %v2070
      %2072 = vmatmul.bf16.gmra.mxu0 %v1930
      %v2073 = vpop.f32.mrf.mxu0
      %v2074 = vadd.f32 %v1932, %v2073
      %v2075 = vpop.f32.mrf.mxu0
      %v2076 = vadd.f32 %v1932, %v2075
      %2077 = vdwg.mxu0
      %2078 = vmatpush.bf16.msra.mxu0 %v2012
      %2079 = vmatpush.bf16.msra.mxu0 %v2011
      %2080 = vmatpush.bf16.msra.mxu0 %v2010
      %2081 = vmatpush.bf16.msra.mxu0 %v2009
      %2082 = vmatpush.bf16.msra.mxu0 %v2008
      %2083 = vmatpush.bf16.msra.mxu0 %v2007
      %2084 = vmatpush.bf16.msra.mxu0 %v2006
      %2085 = vmatpush.bf16.msra.mxu0 %v2005
      %2086 = vmatmul.bf16.gmra.mxu0 %v1917
      %v2087 = vpop.f32.mrf.mxu0
      %v2088 = vadd.f32 %v2039, %v2087
      %v2089 = vpop.f32.mrf.mxu0
      %v2090 = vadd.f32 %v2041, %v2089
      %2091 = vmatmul.bf16.gmra.mxu0 %v1919
      %v2092 = vpop.f32.mrf.mxu0
      %v2093 = vadd.f32 %v2044, %v2092
      %v2094 = vpop.f32.mrf.mxu0
      %v2095 = vadd.f32 %v2046, %v2094
      %2096 = vmatmul.bf16.gmra.mxu0 %v1921
      %v2097 = vpop.f32.mrf.mxu0
      %v2098 = vadd.f32 %v2049, %v2097
      %v2099 = vpop.f32.mrf.mxu0
      %v2100 = vadd.f32 %v2051, %v2099
      %2101 = vmatmul.bf16.gmra.mxu0 %v1923
      %v2102 = vpop.f32.mrf.mxu0
      %v2103 = vadd.f32 %v2054, %v2102
      %v2104 = vpop.f32.mrf.mxu0
      %v2105 = vadd.f32 %v2056, %v2104
      %2106 = vmatmul.bf16.gmra.mxu0 %v1925
      %v2107 = vpop.f32.mrf.mxu0
      %v2108 = vadd.f32 %v2059, %v2107
      %v2109 = vpop.f32.mrf.mxu0
      %v2110 = vadd.f32 %v2061, %v2109
      %2111 = vmatmul.bf16.gmra.mxu0 %v1927
      %v2112 = vpop.f32.mrf.mxu0
      %v2113 = vadd.f32 %v2064, %v2112
      %v2114 = vpop.f32.mrf.mxu0
      %v2115 = vadd.f32 %v2066, %v2114
      %2116 = vmatmul.bf16.gmra.mxu0 %v1929
      %v2117 = vpop.f32.mrf.mxu0
      %v2118 = vadd.f32 %v2069, %v2117
      %v2119 = vpop.f32.mrf.mxu0
      %v2120 = vadd.f32 %v2071, %v2119
      %2121 = vmatmul.bf16.gmra.mxu0 %v1931
      %v2122 = vpop.f32.mrf.mxu0
      %v2123 = vadd.f32 %v2074, %v2122
      %v2124 = vpop.f32.mrf.mxu0
      %v2125 = vadd.f32 %v2076, %v2124
      %2126 = vdwg.mxu0
      %v2127 = vmax.f32 %v2088, 0.0
      %v2128 = vmax.f32 %v2090, 0.0
      %v2129 = vmax.f32 %v2093, 0.0
      %v2130 = vmax.f32 %v2095, 0.0
      %v2131 = vmax.f32 %v2098, 0.0
      %v2132 = vmax.f32 %v2100, 0.0
      %v2133 = vmax.f32 %v2103, 0.0
      %v2134 = vmax.f32 %v2105, 0.0
      %v2135 = vmax.f32 %v2108, 0.0
      %v2136 = vmax.f32 %v2110, 0.0
      %v2137 = vmax.f32 %v2113, 0.0
      %v2138 = vmax.f32 %v2115, 0.0
      %v2139 = vmax.f32 %v2118, 0.0
      %v2140 = vmax.f32 %v2120, 0.0
      %v2141 = vmax.f32 %v2123, 0.0
      %v2142 = vmax.f32 %v2125, 0.0
      %v2143 = vld [vmem:[%s2 + $0x80] sm:$0xf]
      %v2144 = vld [vmem:[%s2 + $0x84] sm:$0xf]
      %v2145 = vld [vmem:[%s2 + $0x88] sm:$0xf]
      %v2146 = vld [vmem:[%s2 + $0x8c] sm:$0xf]
      %v2147 = vld [vmem:[%s2 + $0x90] sm:$0xf]
      %v2148 = vld [vmem:[%s2 + $0x94] sm:$0xf]
      %v2149 = vld [vmem:[%s2 + $0x98] sm:$0xf]
      %v2150 = vld [vmem:[%s2 + $0x9c] sm:$0xf]
      %v2151 = vld [vmem:[%s2 + $0xa0] sm:$0xf]
      %v2152 = vld [vmem:[%s2 + $0xa4] sm:$0xf]
      %v2153 = vld [vmem:[%s2 + $0xa8] sm:$0xf]
      %v2154 = vld [vmem:[%s2 + $0xac] sm:$0xf]
      %v2155 = vld [vmem:[%s2 + $0xb0] sm:$0xf]
      %v2156 = vld [vmem:[%s2 + $0xb4] sm:$0xf]
      %v2157 = vld [vmem:[%s2 + $0xb8] sm:$0xf]
      %v2158 = vld [vmem:[%s2 + $0xbc] sm:$0xf]
      %v2159 = vpack.c.bf16 %v2128, %v2127
      %v2160 = vpack.c.bf16 %v2130, %v2129
      %v2161 = vpack.c.bf16 %v2132, %v2131
      %v2162 = vpack.c.bf16 %v2134, %v2133
      %v2163 = vpack.c.bf16 %v2136, %v2135
      %v2164 = vpack.c.bf16 %v2138, %v2137
      %v2165 = vpack.c.bf16 %v2140, %v2139
      %v2166 = vpack.c.bf16 %v2142, %v2141
      %v2167 = vperm.slane %v205, 2
      %v2184 = vunpack.c.l.b16 %v2143
      %v2185 = vunpack.c.l.b16 %v2144
      %v2186 = vunpack.c.l.b16 %v2145
      %v2187 = vunpack.c.l.b16 %v2146
      %v2188 = vunpack.c.l.b16 %v2147
      %v2189 = vunpack.c.l.b16 %v2148
      %v2190 = vunpack.c.l.b16 %v2149
      %v2191 = vunpack.c.l.b16 %v2150
      %v2192 = vunpack.c.l.b16 %v2151
      %v2193 = vunpack.c.l.b16 %v2152
      %v2194 = vunpack.c.l.b16 %v2153
      %v2195 = vunpack.c.l.b16 %v2154
      %v2196 = vunpack.c.l.b16 %v2155
      %v2197 = vunpack.c.l.b16 %v2156
      %v2198 = vunpack.c.l.b16 %v2157
      %v2199 = vunpack.c.l.b16 %v2158
      %v2200 = vpack.c.b16 %v2185, %v2184
      %v2201 = vpack.c.b16 %v2187, %v2186
      %v2202 = vpack.c.b16 %v2189, %v2188
      %v2203 = vpack.c.b16 %v2191, %v2190
      %v2204 = vpack.c.b16 %v2193, %v2192
      %v2205 = vpack.c.b16 %v2195, %v2194
      %v2206 = vpack.c.b16 %v2197, %v2196
      %v2207 = vpack.c.b16 %v2199, %v2198
      %2216 = vmatpush.bf16.msra.mxu0 %v2207
      %2217 = vmatpush.bf16.msra.mxu0 %v2206
      %2218 = vmatpush.bf16.msra.mxu0 %v2205
      %2219 = vmatpush.bf16.msra.mxu0 %v2204
      %2220 = vmatpush.bf16.msra.mxu0 %v2203
      %2221 = vmatpush.bf16.msra.mxu0 %v2202
      %2222 = vmatpush.bf16.msra.mxu0 %v2201
      %2223 = vmatpush.bf16.msra.mxu0 %v2200
      %2224 = vmatmul.bf16.gmra.mxu0 %v2159
      %v2225 = vpop.f32.mrf.mxu0
      %v2226 = vadd.f32 %v2167, %v2225
      %v2227 = vpop.f32.mrf.mxu0
      %v2228 = vadd.f32 %v2167, %v2227
      %2229 = vmatmul.bf16.gmra.mxu0 %v2160
      %v2230 = vpop.f32.mrf.mxu0
      %v2231 = vadd.f32 %v2167, %v2230
      %v2232 = vpop.f32.mrf.mxu0
      %v2233 = vadd.f32 %v2167, %v2232
      %2234 = vmatmul.bf16.gmra.mxu0 %v2161
      %v2235 = vpop.f32.mrf.mxu0
      %v2236 = vadd.f32 %v2167, %v2235
      %v2237 = vpop.f32.mrf.mxu0
      %v2238 = vadd.f32 %v2167, %v2237
      %2239 = vmatmul.bf16.gmra.mxu0 %v2162
      %v2240 = vpop.f32.mrf.mxu0
      %v2241 = vadd.f32 %v2167, %v2240
      %v2242 = vpop.f32.mrf.mxu0
      %v2243 = vadd.f32 %v2167, %v2242
      %2244 = vmatmul.bf16.gmra.mxu0 %v2163
      %v2245 = vpop.f32.mrf.mxu0
      %v2246 = vadd.f32 %v2167, %v2245
      %v2247 = vpop.f32.mrf.mxu0
      %v2248 = vadd.f32 %v2167, %v2247
      %2249 = vmatmul.bf16.gmra.mxu0 %v2164
      %v2250 = vpop.f32.mrf.mxu0
      %v2251 = vadd.f32 %v2167, %v2250
      %v2252 = vpop.f32.mrf.mxu0
      %v2253 = vadd.f32 %v2167, %v2252
      %2254 = vmatmul.bf16.gmra.mxu0 %v2165
      %v2255 = vpop.f32.mrf.mxu0
      %v2256 = vadd.f32 %v2167, %v2255
      %v2257 = vpop.f32.mrf.mxu0
      %v2258 = vadd.f32 %v2167, %v2257
      %2259 = vmatmul.bf16.gmra.mxu0 %v2166
      %v2260 = vpop.f32.mrf.mxu0
      %v2261 = vadd.f32 %v2167, %v2260
      %v2262 = vpop.f32.mrf.mxu0
      %v2263 = vadd.f32 %v2167, %v2262
      %2264 = vdwg.mxu0
      %v2265 = vmax.f32 %v2226, 0.0
      %v2266 = vmax.f32 %v2228, 0.0
      %v2267 = vmax.f32 %v2231, 0.0
      %v2268 = vmax.f32 %v2233, 0.0
      %v2269 = vmax.f32 %v2236, 0.0
      %v2270 = vmax.f32 %v2238, 0.0
      %v2271 = vmax.f32 %v2241, 0.0
      %v2272 = vmax.f32 %v2243, 0.0
      %v2273 = vmax.f32 %v2246, 0.0
      %v2274 = vmax.f32 %v2248, 0.0
      %v2275 = vmax.f32 %v2251, 0.0
      %v2276 = vmax.f32 %v2253, 0.0
      %v2277 = vmax.f32 %v2256, 0.0
      %v2278 = vmax.f32 %v2258, 0.0
      %v2279 = vmax.f32 %v2261, 0.0
      %v2280 = vmax.f32 %v2263, 0.0
      %v2281 = vld [vmem:[%s2 + $0xc0] sm:$0xf]
      %v2282 = vld [vmem:[%s2 + $0xc4] sm:$0xf]
      %v2283 = vld [vmem:[%s2 + $0xc8] sm:$0xf]
      %v2284 = vld [vmem:[%s2 + $0xcc] sm:$0xf]
      %v2285 = vld [vmem:[%s2 + $0xd0] sm:$0xf]
      %v2286 = vld [vmem:[%s2 + $0xd4] sm:$0xf]
      %v2287 = vld [vmem:[%s2 + $0xd8] sm:$0xf]
      %v2288 = vld [vmem:[%s2 + $0xdc] sm:$0xf]
      %v2289 = vld [vmem:[%s2 + $0xe0] sm:$0xf]
      %v2290 = vld [vmem:[%s2 + $0xe4] sm:$0xf]
      %v2291 = vld [vmem:[%s2 + $0xe8] sm:$0xf]
      %v2292 = vld [vmem:[%s2 + $0xec] sm:$0xf]
      %v2293 = vld [vmem:[%s2 + $0xf0] sm:$0xf]
      %v2294 = vld [vmem:[%s2 + $0xf4] sm:$0xf]
      %v2295 = vld [vmem:[%s2 + $0xf8] sm:$0xf]
      %v2296 = vld [vmem:[%s2 + $0xfc] sm:$0xf]
      %v2297 = vpack.c.bf16 %v2266, %v2265
      %v2298 = vpack.c.bf16 %v2268, %v2267
      %v2299 = vpack.c.bf16 %v2270, %v2269
      %v2300 = vpack.c.bf16 %v2272, %v2271
      %v2301 = vpack.c.bf16 %v2274, %v2273
      %v2302 = vpack.c.bf16 %v2276, %v2275
      %v2303 = vpack.c.bf16 %v2278, %v2277
      %v2304 = vpack.c.bf16 %v2280, %v2279
      %v2305 = vperm.slane %v205, 3
      %v2322 = vunpack.c.l.b16 %v2281
      %v2323 = vunpack.c.l.b16 %v2282
      %v2324 = vunpack.c.l.b16 %v2283
      %v2325 = vunpack.c.l.b16 %v2284
      %v2326 = vunpack.c.l.b16 %v2285
      %v2327 = vunpack.c.l.b16 %v2286
      %v2328 = vunpack.c.l.b16 %v2287
      %v2329 = vunpack.c.l.b16 %v2288
      %v2330 = vunpack.c.l.b16 %v2289
      %v2331 = vunpack.c.l.b16 %v2290
      %v2332 = vunpack.c.l.b16 %v2291
      %v2333 = vunpack.c.l.b16 %v2292
      %v2334 = vunpack.c.l.b16 %v2293
      %v2335 = vunpack.c.l.b16 %v2294
      %v2336 = vunpack.c.l.b16 %v2295
      %v2337 = vunpack.c.l.b16 %v2296
      %v2338 = vpack.c.b16 %v2323, %v2322
      %v2339 = vpack.c.b16 %v2325, %v2324
      %v2340 = vpack.c.b16 %v2327, %v2326
      %v2341 = vpack.c.b16 %v2329, %v2328
      %v2342 = vpack.c.b16 %v2331, %v2330
      %v2343 = vpack.c.b16 %v2333, %v2332
      %v2344 = vpack.c.b16 %v2335, %v2334
      %v2345 = vpack.c.b16 %v2337, %v2336
      %2354 = vmatpush.bf16.msra.mxu0 %v2345
      %2355 = vmatpush.bf16.msra.mxu0 %v2344
      %2356 = vmatpush.bf16.msra.mxu0 %v2343
      %2357 = vmatpush.bf16.msra.mxu0 %v2342
      %2358 = vmatpush.bf16.msra.mxu0 %v2341
      %2359 = vmatpush.bf16.msra.mxu0 %v2340
      %2360 = vmatpush.bf16.msra.mxu0 %v2339
      %2361 = vmatpush.bf16.msra.mxu0 %v2338
      %2362 = vmatmul.bf16.gmra.mxu0 %v2297
      %v2363 = vpop.f32.mrf.mxu0
      %v2364 = vadd.f32 %v2305, %v2363
      %v2365 = vpop.f32.mrf.mxu0
      %v2366 = vadd.f32 %v2305, %v2365
      %2367 = vmatmul.bf16.gmra.mxu0 %v2298
      %v2368 = vpop.f32.mrf.mxu0
      %v2369 = vadd.f32 %v2305, %v2368
      %v2370 = vpop.f32.mrf.mxu0
      %v2371 = vadd.f32 %v2305, %v2370
      %2372 = vmatmul.bf16.gmra.mxu0 %v2299
      %v2373 = vpop.f32.mrf.mxu0
      %v2374 = vadd.f32 %v2305, %v2373
      %v2375 = vpop.f32.mrf.mxu0
      %v2376 = vadd.f32 %v2305, %v2375
      %2377 = vmatmul.bf16.gmra.mxu0 %v2300
      %v2378 = vpop.f32.mrf.mxu0
      %v2379 = vadd.f32 %v2305, %v2378
      %v2380 = vpop.f32.mrf.mxu0
      %v2381 = vadd.f32 %v2305, %v2380
      %2382 = vmatmul.bf16.gmra.mxu0 %v2301
      %v2383 = vpop.f32.mrf.mxu0
      %v2384 = vadd.f32 %v2305, %v2383
      %v2385 = vpop.f32.mrf.mxu0
      %v2386 = vadd.f32 %v2305, %v2385
      %2387 = vmatmul.bf16.gmra.mxu0 %v2302
      %v2388 = vpop.f32.mrf.mxu0
      %v2389 = vadd.f32 %v2305, %v2388
      %v2390 = vpop.f32.mrf.mxu0
      %v2391 = vadd.f32 %v2305, %v2390
      %2392 = vmatmul.bf16.gmra.mxu0 %v2303
      %v2393 = vpop.f32.mrf.mxu0
      %v2394 = vadd.f32 %v2305, %v2393
      %v2395 = vpop.f32.mrf.mxu0
      %v2396 = vadd.f32 %v2305, %v2395
      %2397 = vmatmul.bf16.gmra.mxu0 %v2304
      %v2398 = vpop.f32.mrf.mxu0
      %v2399 = vadd.f32 %v2305, %v2398
      %v2400 = vpop.f32.mrf.mxu0
      %v2401 = vadd.f32 %v2305, %v2400
      %2402 = vdwg.mxu0
      %v2403 = vmax.f32 %v2364, 0.0
      %v2404 = vmax.f32 %v2366, 0.0
      %v2405 = vmax.f32 %v2369, 0.0
      %v2406 = vmax.f32 %v2371, 0.0
      %v2407 = vmax.f32 %v2374, 0.0
      %v2408 = vmax.f32 %v2376, 0.0
      %v2409 = vmax.f32 %v2379, 0.0
      %v2410 = vmax.f32 %v2381, 0.0
      %v2411 = vmax.f32 %v2384, 0.0
      %v2412 = vmax.f32 %v2386, 0.0
      %v2413 = vmax.f32 %v2389, 0.0
      %v2414 = vmax.f32 %v2391, 0.0
      %v2415 = vmax.f32 %v2394, 0.0
      %v2416 = vmax.f32 %v2396, 0.0
      %v2417 = vmax.f32 %v2399, 0.0
      %v2418 = vmax.f32 %v2401, 0.0
      %v2419 = vld [vmem:[%s2 + $0x100] sm:$0xf]
      %v2420 = vld [vmem:[%s2 + $0x104] sm:$0xf]
      %v2421 = vld [vmem:[%s2 + $0x108] sm:$0xf]
      %v2422 = vld [vmem:[%s2 + $0x10c] sm:$0xf]
      %v2423 = vld [vmem:[%s2 + $0x110] sm:$0xf]
      %v2424 = vld [vmem:[%s2 + $0x114] sm:$0xf]
      %v2425 = vld [vmem:[%s2 + $0x118] sm:$0xf]
      %v2426 = vld [vmem:[%s2 + $0x11c] sm:$0xf]
      %v2427 = vld [vmem:[%s2 + $0x120] sm:$0xf]
      %v2428 = vld [vmem:[%s2 + $0x124] sm:$0xf]
      %v2429 = vld [vmem:[%s2 + $0x128] sm:$0xf]
      %v2430 = vld [vmem:[%s2 + $0x12c] sm:$0xf]
      %v2431 = vld [vmem:[%s2 + $0x130] sm:$0xf]
      %v2432 = vld [vmem:[%s2 + $0x134] sm:$0xf]
      %v2433 = vld [vmem:[%s2 + $0x138] sm:$0xf]
      %v2434 = vld [vmem:[%s2 + $0x13c] sm:$0xf]
      %v2435 = vpack.c.bf16 %v2404, %v2403
      %v2436 = vpack.c.bf16 %v2406, %v2405
      %v2437 = vpack.c.bf16 %v2408, %v2407
      %v2438 = vpack.c.bf16 %v2410, %v2409
      %v2439 = vpack.c.bf16 %v2412, %v2411
      %v2440 = vpack.c.bf16 %v2414, %v2413
      %v2441 = vpack.c.bf16 %v2416, %v2415
      %v2442 = vpack.c.bf16 %v2418, %v2417
      %v2443 = vperm.slane %v205, 4
      %v2460 = vunpack.c.l.b16 %v2419
      %v2461 = vunpack.c.l.b16 %v2420
      %v2462 = vunpack.c.l.b16 %v2421
      %v2463 = vunpack.c.l.b16 %v2422
      %v2464 = vunpack.c.l.b16 %v2423
      %v2465 = vunpack.c.l.b16 %v2424
      %v2466 = vunpack.c.l.b16 %v2425
      %v2467 = vunpack.c.l.b16 %v2426
      %v2468 = vunpack.c.l.b16 %v2427
      %v2469 = vunpack.c.l.b16 %v2428
      %v2470 = vunpack.c.l.b16 %v2429
      %v2471 = vunpack.c.l.b16 %v2430
      %v2472 = vunpack.c.l.b16 %v2431
      %v2473 = vunpack.c.l.b16 %v2432
      %v2474 = vunpack.c.l.b16 %v2433
      %v2475 = vunpack.c.l.b16 %v2434
      %v2476 = vpack.c.b16 %v2461, %v2460
      %v2477 = vpack.c.b16 %v2463, %v2462
      %v2478 = vpack.c.b16 %v2465, %v2464
      %v2479 = vpack.c.b16 %v2467, %v2466
      %v2480 = vpack.c.b16 %v2469, %v2468
      %v2481 = vpack.c.b16 %v2471, %v2470
      %v2482 = vpack.c.b16 %v2473, %v2472
      %v2483 = vpack.c.b16 %v2475, %v2474
      %2492 = vmatpush.bf16.msra.mxu0 %v2483
      %2493 = vmatpush.bf16.msra.mxu0 %v2482
      %2494 = vmatpush.bf16.msra.mxu0 %v2481
      %2495 = vmatpush.bf16.msra.mxu0 %v2480
      %2496 = vmatpush.bf16.msra.mxu0 %v2479
      %2497 = vmatpush.bf16.msra.mxu0 %v2478
      %2498 = vmatpush.bf16.msra.mxu0 %v2477
      %2499 = vmatpush.bf16.msra.mxu0 %v2476
      %2500 = vmatmul.bf16.gmra.mxu0 %v2435
      %v2501 = vpop.f32.mrf.mxu0
      %v2502 = vadd.f32 %v2443, %v2501
      %v2503 = vpop.f32.mrf.mxu0
      %v2504 = vadd.f32 %v2443, %v2503
      %2505 = vmatmul.bf16.gmra.mxu0 %v2436
      %v2506 = vpop.f32.mrf.mxu0
      %v2507 = vadd.f32 %v2443, %v2506
      %v2508 = vpop.f32.mrf.mxu0
      %v2509 = vadd.f32 %v2443, %v2508
      %2510 = vmatmul.bf16.gmra.mxu0 %v2437
      %v2511 = vpop.f32.mrf.mxu0
      %v2512 = vadd.f32 %v2443, %v2511
      %v2513 = vpop.f32.mrf.mxu0
      %v2514 = vadd.f32 %v2443, %v2513
      %2515 = vmatmul.bf16.gmra.mxu0 %v2438
      %v2516 = vpop.f32.mrf.mxu0
      %v2517 = vadd.f32 %v2443, %v2516
      %v2518 = vpop.f32.mrf.mxu0
      %v2519 = vadd.f32 %v2443, %v2518
      %2520 = vmatmul.bf16.gmra.mxu0 %v2439
      %v2521 = vpop.f32.mrf.mxu0
      %v2522 = vadd.f32 %v2443, %v2521
      %v2523 = vpop.f32.mrf.mxu0
      %v2524 = vadd.f32 %v2443, %v2523
      %2525 = vmatmul.bf16.gmra.mxu0 %v2440
      %v2526 = vpop.f32.mrf.mxu0
      %v2527 = vadd.f32 %v2443, %v2526
      %v2528 = vpop.f32.mrf.mxu0
      %v2529 = vadd.f32 %v2443, %v2528
      %2530 = vmatmul.bf16.gmra.mxu0 %v2441
      %v2531 = vpop.f32.mrf.mxu0
      %v2532 = vadd.f32 %v2443, %v2531
      %v2533 = vpop.f32.mrf.mxu0
      %v2534 = vadd.f32 %v2443, %v2533
      %2535 = vmatmul.bf16.gmra.mxu0 %v2442
      %v2536 = vpop.f32.mrf.mxu0
      %v2537 = vadd.f32 %v2443, %v2536
      %v2538 = vpop.f32.mrf.mxu0
      %v2539 = vadd.f32 %v2443, %v2538
      %2540 = vdwg.mxu0
      %v2541 = vmax.f32 %v2502, 0.0
      %v2542 = vmax.f32 %v2504, 0.0
      %v2543 = vmax.f32 %v2507, 0.0
      %v2544 = vmax.f32 %v2509, 0.0
      %v2545 = vmax.f32 %v2512, 0.0
      %v2546 = vmax.f32 %v2514, 0.0
      %v2547 = vmax.f32 %v2517, 0.0
      %v2548 = vmax.f32 %v2519, 0.0
      %v2549 = vmax.f32 %v2522, 0.0
      %v2550 = vmax.f32 %v2524, 0.0
      %v2551 = vmax.f32 %v2527, 0.0
      %v2552 = vmax.f32 %v2529, 0.0
      %v2553 = vmax.f32 %v2532, 0.0
      %v2554 = vmax.f32 %v2534, 0.0
      %v2555 = vmax.f32 %v2537, 0.0
      %v2556 = vmax.f32 %v2539, 0.0
      %v2557 = vld [vmem:[%s2 + $0x140] sm:$0xf]
      %v2558 = vld [vmem:[%s2 + $0x144] sm:$0xf]
      %v2559 = vld [vmem:[%s2 + $0x148] sm:$0xf]
      %v2560 = vld [vmem:[%s2 + $0x14c] sm:$0xf]
      %v2561 = vld [vmem:[%s2 + $0x150] sm:$0xf]
      %v2562 = vld [vmem:[%s2 + $0x154] sm:$0xf]
      %v2563 = vld [vmem:[%s2 + $0x158] sm:$0xf]
      %v2564 = vld [vmem:[%s2 + $0x15c] sm:$0xf]
      %v2565 = vld [vmem:[%s2 + $0x160] sm:$0xf]
      %v2566 = vld [vmem:[%s2 + $0x164] sm:$0xf]
      %v2567 = vld [vmem:[%s2 + $0x168] sm:$0xf]
      %v2568 = vld [vmem:[%s2 + $0x16c] sm:$0xf]
      %v2569 = vld [vmem:[%s2 + $0x170] sm:$0xf]
      %v2570 = vld [vmem:[%s2 + $0x174] sm:$0xf]
      %v2571 = vld [vmem:[%s2 + $0x178] sm:$0xf]
      %v2572 = vld [vmem:[%s2 + $0x17c] sm:$0xf]
      %v2573 = vpack.c.bf16 %v2542, %v2541
      %v2574 = vpack.c.bf16 %v2544, %v2543
      %v2575 = vpack.c.bf16 %v2546, %v2545
      %v2576 = vpack.c.bf16 %v2548, %v2547
      %v2577 = vpack.c.bf16 %v2550, %v2549
      %v2578 = vpack.c.bf16 %v2552, %v2551
      %v2579 = vpack.c.bf16 %v2554, %v2553
      %v2580 = vpack.c.bf16 %v2556, %v2555
      %v2581 = vperm.slane %v205, 5
      %v2598 = vunpack.c.l.b16 %v2557
      %v2599 = vunpack.c.l.b16 %v2558
      %v2600 = vunpack.c.l.b16 %v2559
      %v2601 = vunpack.c.l.b16 %v2560
      %v2602 = vunpack.c.l.b16 %v2561
      %v2603 = vunpack.c.l.b16 %v2562
      %v2604 = vunpack.c.l.b16 %v2563
      %v2605 = vunpack.c.l.b16 %v2564
      %v2606 = vunpack.c.l.b16 %v2565
      %v2607 = vunpack.c.l.b16 %v2566
      %v2608 = vunpack.c.l.b16 %v2567
      %v2609 = vunpack.c.l.b16 %v2568
      %v2610 = vunpack.c.l.b16 %v2569
      %v2611 = vunpack.c.l.b16 %v2570
      %v2612 = vunpack.c.l.b16 %v2571
      %v2613 = vunpack.c.l.b16 %v2572
      %v2614 = vpack.c.b16 %v2599, %v2598
      %v2615 = vpack.c.b16 %v2601, %v2600
      %v2616 = vpack.c.b16 %v2603, %v2602
      %v2617 = vpack.c.b16 %v2605, %v2604
      %v2618 = vpack.c.b16 %v2607, %v2606
      %v2619 = vpack.c.b16 %v2609, %v2608
      %v2620 = vpack.c.b16 %v2611, %v2610
      %v2621 = vpack.c.b16 %v2613, %v2612
      %2630 = vmatpush.bf16.msra.mxu0 %v2621
      %2631 = vmatpush.bf16.msra.mxu0 %v2620
      %2632 = vmatpush.bf16.msra.mxu0 %v2619
      %2633 = vmatpush.bf16.msra.mxu0 %v2618
      %2634 = vmatpush.bf16.msra.mxu0 %v2617
      %2635 = vmatpush.bf16.msra.mxu0 %v2616
      %2636 = vmatpush.bf16.msra.mxu0 %v2615
      %2637 = vmatpush.bf16.msra.mxu0 %v2614
      %2638 = vmatmul.bf16.gmra.mxu0 %v2573
      %v2639 = vpop.f32.mrf.mxu0
      %v2640 = vadd.f32 %v2581, %v2639
      %v2641 = vpop.f32.mrf.mxu0
      %v2642 = vadd.f32 %v2581, %v2641
      %2643 = vmatmul.bf16.gmra.mxu0 %v2574
      %v2644 = vpop.f32.mrf.mxu0
      %v2645 = vadd.f32 %v2581, %v2644
      %v2646 = vpop.f32.mrf.mxu0
      %v2647 = vadd.f32 %v2581, %v2646
      %2648 = vmatmul.bf16.gmra.mxu0 %v2575
      %v2649 = vpop.f32.mrf.mxu0
      %v2650 = vadd.f32 %v2581, %v2649
      %v2651 = vpop.f32.mrf.mxu0
      %v2652 = vadd.f32 %v2581, %v2651
      %2653 = vmatmul.bf16.gmra.mxu0 %v2576
      %v2654 = vpop.f32.mrf.mxu0
      %v2655 = vadd.f32 %v2581, %v2654
      %v2656 = vpop.f32.mrf.mxu0
      %v2657 = vadd.f32 %v2581, %v2656
      %2658 = vmatmul.bf16.gmra.mxu0 %v2577
      %v2659 = vpop.f32.mrf.mxu0
      %v2660 = vadd.f32 %v2581, %v2659
      %v2661 = vpop.f32.mrf.mxu0
      %v2662 = vadd.f32 %v2581, %v2661
      %2663 = vmatmul.bf16.gmra.mxu0 %v2578
      %v2664 = vpop.f32.mrf.mxu0
      %v2665 = vadd.f32 %v2581, %v2664
      %v2666 = vpop.f32.mrf.mxu0
      %v2667 = vadd.f32 %v2581, %v2666
      %2668 = vmatmul.bf16.gmra.mxu0 %v2579
      %v2669 = vpop.f32.mrf.mxu0
      %v2670 = vadd.f32 %v2581, %v2669
      %v2671 = vpop.f32.mrf.mxu0
      %v2672 = vadd.f32 %v2581, %v2671
      %2673 = vmatmul.bf16.gmra.mxu0 %v2580
      %v2674 = vpop.f32.mrf.mxu0
      %v2675 = vadd.f32 %v2581, %v2674
      %v2676 = vpop.f32.mrf.mxu0
      %v2677 = vadd.f32 %v2581, %v2676
      %2678 = vdwg.mxu0
      %v2679 = vmax.f32 %v2640, 0.0
      %v2680 = vmax.f32 %v2642, 0.0
      %v2681 = vmax.f32 %v2645, 0.0
      %v2682 = vmax.f32 %v2647, 0.0
      %v2683 = vmax.f32 %v2650, 0.0
      %v2684 = vmax.f32 %v2652, 0.0
      %v2685 = vmax.f32 %v2655, 0.0
      %v2686 = vmax.f32 %v2657, 0.0
      %v2687 = vmax.f32 %v2660, 0.0
      %v2688 = vmax.f32 %v2662, 0.0
      %v2689 = vmax.f32 %v2665, 0.0
      %v2690 = vmax.f32 %v2667, 0.0
      %v2691 = vmax.f32 %v2670, 0.0
      %v2692 = vmax.f32 %v2672, 0.0
      %v2693 = vmax.f32 %v2675, 0.0
      %v2694 = vmax.f32 %v2677, 0.0
      %v2695 = vld [vmem:[%s2 + $0x180] sm:$0xf]
      %v2696 = vld [vmem:[%s2 + $0x184] sm:$0xf]
      %v2697 = vld [vmem:[%s2 + $0x188] sm:$0xf]
      %v2698 = vld [vmem:[%s2 + $0x18c] sm:$0xf]
      %v2699 = vld [vmem:[%s2 + $0x190] sm:$0xf]
      %v2700 = vld [vmem:[%s2 + $0x194] sm:$0xf]
      %v2701 = vld [vmem:[%s2 + $0x198] sm:$0xf]
      %v2702 = vld [vmem:[%s2 + $0x19c] sm:$0xf]
      %v2703 = vld [vmem:[%s2 + $0x1a0] sm:$0xf]
      %v2704 = vld [vmem:[%s2 + $0x1a4] sm:$0xf]
      %v2705 = vld [vmem:[%s2 + $0x1a8] sm:$0xf]
      %v2706 = vld [vmem:[%s2 + $0x1ac] sm:$0xf]
      %v2707 = vld [vmem:[%s2 + $0x1b0] sm:$0xf]
      %v2708 = vld [vmem:[%s2 + $0x1b4] sm:$0xf]
      %v2709 = vld [vmem:[%s2 + $0x1b8] sm:$0xf]
      %v2710 = vld [vmem:[%s2 + $0x1bc] sm:$0xf]
      %v2711 = vpack.c.bf16 %v2680, %v2679
      %v2712 = vpack.c.bf16 %v2682, %v2681
      %v2713 = vpack.c.bf16 %v2684, %v2683
      %v2714 = vpack.c.bf16 %v2686, %v2685
      %v2715 = vpack.c.bf16 %v2688, %v2687
      %v2716 = vpack.c.bf16 %v2690, %v2689
      %v2717 = vpack.c.bf16 %v2692, %v2691
      %v2718 = vpack.c.bf16 %v2694, %v2693
      %v2719 = vperm.slane %v205, 6
      %v2736 = vunpack.c.l.b16 %v2695
      %v2737 = vunpack.c.l.b16 %v2696
      %v2738 = vunpack.c.l.b16 %v2697
      %v2739 = vunpack.c.l.b16 %v2698
      %v2740 = vunpack.c.l.b16 %v2699
      %v2741 = vunpack.c.l.b16 %v2700
      %v2742 = vunpack.c.l.b16 %v2701
      %v2743 = vunpack.c.l.b16 %v2702
      %v2744 = vunpack.c.l.b16 %v2703
      %v2745 = vunpack.c.l.b16 %v2704
      %v2746 = vunpack.c.l.b16 %v2705
      %v2747 = vunpack.c.l.b16 %v2706
      %v2748 = vunpack.c.l.b16 %v2707
      %v2749 = vunpack.c.l.b16 %v2708
      %v2750 = vunpack.c.l.b16 %v2709
      %v2751 = vunpack.c.l.b16 %v2710
      %v2752 = vpack.c.b16 %v2737, %v2736
      %v2753 = vpack.c.b16 %v2739, %v2738
      %v2754 = vpack.c.b16 %v2741, %v2740
      %v2755 = vpack.c.b16 %v2743, %v2742
      %v2756 = vpack.c.b16 %v2745, %v2744
      %v2757 = vpack.c.b16 %v2747, %v2746
      %v2758 = vpack.c.b16 %v2749, %v2748
      %v2759 = vpack.c.b16 %v2751, %v2750
      %2768 = vmatpush.bf16.msra.mxu0 %v2759
      %2769 = vmatpush.bf16.msra.mxu0 %v2758
      %2770 = vmatpush.bf16.msra.mxu0 %v2757
      %2771 = vmatpush.bf16.msra.mxu0 %v2756
      %2772 = vmatpush.bf16.msra.mxu0 %v2755
      %2773 = vmatpush.bf16.msra.mxu0 %v2754
      %2774 = vmatpush.bf16.msra.mxu0 %v2753
      %2775 = vmatpush.bf16.msra.mxu0 %v2752
      %2776 = vmatmul.bf16.gmra.mxu0 %v2711
      %v2777 = vpop.f32.mrf.mxu0
      %v2778 = vadd.f32 %v2719, %v2777
      %v2779 = vpop.f32.mrf.mxu0
      %v2780 = vadd.f32 %v2719, %v2779
      %2781 = vmatmul.bf16.gmra.mxu0 %v2712
      %v2782 = vpop.f32.mrf.mxu0
      %v2783 = vadd.f32 %v2719, %v2782
      %v2784 = vpop.f32.mrf.mxu0
      %v2785 = vadd.f32 %v2719, %v2784
      %2786 = vmatmul.bf16.gmra.mxu0 %v2713
      %v2787 = vpop.f32.mrf.mxu0
      %v2788 = vadd.f32 %v2719, %v2787
      %v2789 = vpop.f32.mrf.mxu0
      %v2790 = vadd.f32 %v2719, %v2789
      %2791 = vmatmul.bf16.gmra.mxu0 %v2714
      %v2792 = vpop.f32.mrf.mxu0
      %v2793 = vadd.f32 %v2719, %v2792
      %v2794 = vpop.f32.mrf.mxu0
      %v2795 = vadd.f32 %v2719, %v2794
      %2796 = vmatmul.bf16.gmra.mxu0 %v2715
      %v2797 = vpop.f32.mrf.mxu0
      %v2798 = vadd.f32 %v2719, %v2797
      %v2799 = vpop.f32.mrf.mxu0
      %v2800 = vadd.f32 %v2719, %v2799
      %2801 = vmatmul.bf16.gmra.mxu0 %v2716
      %v2802 = vpop.f32.mrf.mxu0
      %v2803 = vadd.f32 %v2719, %v2802
      %v2804 = vpop.f32.mrf.mxu0
      %v2805 = vadd.f32 %v2719, %v2804
      %2806 = vmatmul.bf16.gmra.mxu0 %v2717
      %v2807 = vpop.f32.mrf.mxu0
      %v2808 = vadd.f32 %v2719, %v2807
      %v2809 = vpop.f32.mrf.mxu0
      %v2810 = vadd.f32 %v2719, %v2809
      %2811 = vmatmul.bf16.gmra.mxu0 %v2718
      %v2812 = vpop.f32.mrf.mxu0
      %v2813 = vadd.f32 %v2719, %v2812
      %v2814 = vpop.f32.mrf.mxu0
      %v2815 = vadd.f32 %v2719, %v2814
      %2816 = vdwg.mxu0
      %v2817 = vlaneseq
      %v2818 = vand.u32 %v2817, 127
      %vm2819 = vcmp.lt.s32.totalorder %v2818, 10
      %v2820 = vsel %vm2819, %v2778, -1e+30
      %v2821 = vsel %vm2819, %v2780, -1e+30
      %v2822 = vsel %vm2819, %v2783, -1e+30
      %v2823 = vsel %vm2819, %v2785, -1e+30
      %v2824 = vsel %vm2819, %v2788, -1e+30
      %v2825 = vsel %vm2819, %v2790, -1e+30
      %v2826 = vsel %vm2819, %v2793, -1e+30
      %v2827 = vsel %vm2819, %v2795, -1e+30
      %v2828 = vsel %vm2819, %v2798, -1e+30
      %v2829 = vsel %vm2819, %v2800, -1e+30
      %v2830 = vsel %vm2819, %v2803, -1e+30
      %v2831 = vsel %vm2819, %v2805, -1e+30
      %v2832 = vsel %vm2819, %v2808, -1e+30
      %v2833 = vsel %vm2819, %v2810, -1e+30
      %v2834 = vsel %vm2819, %v2813, -1e+30
      %v2835 = vsel %vm2819, %v2815, -1e+30
      %2836 = vmax.xlane.f32.xlu0 %v2820
      %v2837 = vpop.xlane.xlu0 %2836
      %2838 = vmax.xlane.f32.xlu0 %v2821
      %v2839 = vpop.xlane.xlu0 %2838
      %2840 = vmax.xlane.f32.xlu0 %v2822
      %v2841 = vpop.xlane.xlu0 %2840
      %2842 = vmax.xlane.f32.xlu0 %v2823
      %v2843 = vpop.xlane.xlu0 %2842
      %2844 = vmax.xlane.f32.xlu0 %v2824
      %v2845 = vpop.xlane.xlu0 %2844
      %2846 = vmax.xlane.f32.xlu0 %v2825
      %v2847 = vpop.xlane.xlu0 %2846
      %2848 = vmax.xlane.f32.xlu0 %v2826
      %v2849 = vpop.xlane.xlu0 %2848
      %2850 = vmax.xlane.f32.xlu0 %v2827
      %v2851 = vpop.xlane.xlu0 %2850
      %2852 = vmax.xlane.f32.xlu0 %v2828
      %v2853 = vpop.xlane.xlu0 %2852
      %2854 = vmax.xlane.f32.xlu0 %v2829
      %v2855 = vpop.xlane.xlu0 %2854
      %2856 = vmax.xlane.f32.xlu0 %v2830
      %v2857 = vpop.xlane.xlu0 %2856
      %2858 = vmax.xlane.f32.xlu0 %v2831
      %v2859 = vpop.xlane.xlu0 %2858
      %2860 = vmax.xlane.f32.xlu0 %v2832
      %v2861 = vpop.xlane.xlu0 %2860
      %2862 = vmax.xlane.f32.xlu0 %v2833
      %v2863 = vpop.xlane.xlu0 %2862
      %2864 = vmax.xlane.f32.xlu0 %v2834
      %v2865 = vpop.xlane.xlu0 %2864
      %2866 = vmax.xlane.f32.xlu0 %v2835
      %v2867 = vpop.xlane.xlu0 %2866
      %v2868 = vsub.f32 %v2820, %v2837
      %v2869 = vsub.f32 %v2821, %v2839
      %v2870 = vsub.f32 %v2822, %v2841
      %v2871 = vsub.f32 %v2823, %v2843
      %v2872 = vsub.f32 %v2824, %v2845
      %v2873 = vsub.f32 %v2825, %v2847
      %v2874 = vsub.f32 %v2826, %v2849
      %v2875 = vsub.f32 %v2827, %v2851
      %v2876 = vsub.f32 %v2828, %v2853
      %v2877 = vsub.f32 %v2829, %v2855
      %v2878 = vsub.f32 %v2830, %v2857
      %v2879 = vsub.f32 %v2831, %v2859
      %v2880 = vsub.f32 %v2832, %v2861
      %v2881 = vsub.f32 %v2833, %v2863
      %v2882 = vsub.f32 %v2834, %v2865
      %v2883 = vsub.f32 %v2835, %v2867
      %v2884 = vmul.f32 %v2868, 1.442695
      %v2885 = vpow.pop %v2884
      %v2886 = vmul.f32 %v2869, 1.442695
      %v2887 = vpow.pop %v2886
      %v2888 = vmul.f32 %v2870, 1.442695
      %v2889 = vpow.pop %v2888
      %v2890 = vmul.f32 %v2871, 1.442695
      %v2891 = vpow.pop %v2890
      %v2892 = vmul.f32 %v2872, 1.442695
      %v2893 = vpow.pop %v2892
      %v2894 = vmul.f32 %v2873, 1.442695
      %v2895 = vpow.pop %v2894
      %v2896 = vmul.f32 %v2874, 1.442695
      %v2897 = vpow.pop %v2896
      %v2898 = vmul.f32 %v2875, 1.442695
      %v2899 = vpow.pop %v2898
      %v2900 = vmul.f32 %v2876, 1.442695
      %v2901 = vpow.pop %v2900
      %v2902 = vmul.f32 %v2877, 1.442695
      %v2903 = vpow.pop %v2902
      %v2904 = vmul.f32 %v2878, 1.442695
      %v2905 = vpow.pop %v2904
      %v2906 = vmul.f32 %v2879, 1.442695
      %v2907 = vpow.pop %v2906
      %v2908 = vmul.f32 %v2880, 1.442695
      %v2909 = vpow.pop %v2908
      %v2910 = vmul.f32 %v2881, 1.442695
      %v2911 = vpow.pop %v2910
      %v2912 = vmul.f32 %v2882, 1.442695
      %v2913 = vpow.pop %v2912
      %v2914 = vmul.f32 %v2883, 1.442695
      %v2915 = vpow.pop %v2914
      %v2916 = vsel %vm2819, %v2885, 0.0
      %v2917 = vsel %vm2819, %v2887, 0.0
      %v2918 = vsel %vm2819, %v2889, 0.0
      %v2919 = vsel %vm2819, %v2891, 0.0
      %v2920 = vsel %vm2819, %v2893, 0.0
      %v2921 = vsel %vm2819, %v2895, 0.0
      %v2922 = vsel %vm2819, %v2897, 0.0
      %v2923 = vsel %vm2819, %v2899, 0.0
      %v2924 = vsel %vm2819, %v2901, 0.0
      %v2925 = vsel %vm2819, %v2903, 0.0
      %v2926 = vsel %vm2819, %v2905, 0.0
      %v2927 = vsel %vm2819, %v2907, 0.0
      %v2928 = vsel %vm2819, %v2909, 0.0
      %v2929 = vsel %vm2819, %v2911, 0.0
      %v2930 = vsel %vm2819, %v2913, 0.0
      %v2931 = vsel %vm2819, %v2915, 0.0
      %2932 = vadd.xlane.f32.xlu0 %v2916
      %v2933 = vpop.xlane.xlu0 %2932
      %2934 = vadd.xlane.f32.xlu0 %v2917
      %v2935 = vpop.xlane.xlu0 %2934
      %2936 = vadd.xlane.f32.xlu0 %v2918
      %v2937 = vpop.xlane.xlu0 %2936
      %2938 = vadd.xlane.f32.xlu0 %v2919
      %v2939 = vpop.xlane.xlu0 %2938
      %2940 = vadd.xlane.f32.xlu0 %v2920
      %v2941 = vpop.xlane.xlu0 %2940
      %2942 = vadd.xlane.f32.xlu0 %v2921
      %v2943 = vpop.xlane.xlu0 %2942
      %2944 = vadd.xlane.f32.xlu0 %v2922
      %v2945 = vpop.xlane.xlu0 %2944
      %2946 = vadd.xlane.f32.xlu0 %v2923
      %v2947 = vpop.xlane.xlu0 %2946
      %2948 = vadd.xlane.f32.xlu0 %v2924
      %v2949 = vpop.xlane.xlu0 %2948
      %2950 = vadd.xlane.f32.xlu0 %v2925
      %v2951 = vpop.xlane.xlu0 %2950
      %2952 = vadd.xlane.f32.xlu0 %v2926
      %v2953 = vpop.xlane.xlu0 %2952
      %2954 = vadd.xlane.f32.xlu0 %v2927
      %v2955 = vpop.xlane.xlu0 %2954
      %2956 = vadd.xlane.f32.xlu0 %v2928
      %v2957 = vpop.xlane.xlu0 %2956
      %2958 = vadd.xlane.f32.xlu0 %v2929
      %v2959 = vpop.xlane.xlu0 %2958
      %2960 = vadd.xlane.f32.xlu0 %v2930
      %v2961 = vpop.xlane.xlu0 %2960
      %2962 = vadd.xlane.f32.xlu0 %v2931
      %v2963 = vpop.xlane.xlu0 %2962
      %v2964 = vrcp.pop %v2933
      %v2965 = vrcp.pop %v2935
      %v2966 = vrcp.pop %v2937
      %v2967 = vrcp.pop %v2939
      %v2968 = vrcp.pop %v2941
      %v2969 = vrcp.pop %v2943
      %v2970 = vrcp.pop %v2945
      %v2971 = vrcp.pop %v2947
      %v2972 = vrcp.pop %v2949
      %v2973 = vrcp.pop %v2951
      %v2974 = vrcp.pop %v2953
      %v2975 = vrcp.pop %v2955
      %v2976 = vrcp.pop %v2957
      %v2977 = vrcp.pop %v2959
      %v2978 = vrcp.pop %v2961
      %v2979 = vrcp.pop %v2963
      %v2980 = vmul.f32 %v2916, %v2964
      %v2981 = vmul.f32 %v2917, %v2965
      %v2982 = vmul.f32 %v2918, %v2966
      %v2983 = vmul.f32 %v2919, %v2967
      %v2984 = vmul.f32 %v2920, %v2968
      %v2985 = vmul.f32 %v2921, %v2969
      %v2986 = vmul.f32 %v2922, %v2970
      %v2987 = vmul.f32 %v2923, %v2971
      %v2988 = vmul.f32 %v2924, %v2972
      %v2989 = vmul.f32 %v2925, %v2973
      %v2990 = vmul.f32 %v2926, %v2974
      %v2991 = vmul.f32 %v2927, %v2975
      %v2992 = vmul.f32 %v2928, %v2976
      %v2993 = vmul.f32 %v2929, %v2977
      %v2994 = vmul.f32 %v2930, %v2978
      %v2995 = vmul.f32 %v2931, %v2979
      %2996 = vst [vmem:[%s202] sm:$0xff] %v2980
      %2997 = vst [vmem:[%s202 + $0x8] sm:$0xff] %v2981
      %2998 = vst [vmem:[%s202 + $0x10] sm:$0xff] %v2982
      %2999 = vst [vmem:[%s202 + $0x18] sm:$0xff] %v2983
      %3000 = vst [vmem:[%s202 + $0x20] sm:$0xff] %v2984
      %3001 = vst [vmem:[%s202 + $0x28] sm:$0xff] %v2985
      %3002 = vst [vmem:[%s202 + $0x30] sm:$0xff] %v2986
      %3003 = vst [vmem:[%s202 + $0x38] sm:$0xff] %v2987
      %3004 = vst [vmem:[%s202 + $0x40] sm:$0xff] %v2988
      %3005 = vst [vmem:[%s202 + $0x48] sm:$0xff] %v2989
      %3006 = vst [vmem:[%s202 + $0x50] sm:$0xff] %v2990
      %3007 = vst [vmem:[%s202 + $0x58] sm:$0xff] %v2991
      %3008 = vst [vmem:[%s202 + $0x60] sm:$0xff] %v2992
      %3009 = vst [vmem:[%s202 + $0x68] sm:$0xff] %v2993
      %3010 = vst [vmem:[%s202 + $0x70] sm:$0xff] %v2994
      %3011 = vst [vmem:[%s202 + $0x78] sm:$0xff] %v2995
      %s3012 = smul.u32 16, %s15
      %p3013 = scmp.lt.s32.totalorder %s3012, 31
      %s3014 = scalar_select %p3013, %s3012, 31
      %s3015 = smul.addr %s3014, 8
      %s3016 = scalar_lea.vmem %s4, %s3015
      // Predicated region
      $region37: #{_net_v1_forward_impl.1} parent=35 // pred_check
        %p3017 = pneg %p122
      $region38: #{_net_v1_forward_impl.1} parent=35 // pred_check_branch
        %3019 = sbr.rel (%p3017) target = $region40
      $region39: #{_net_v1_forward_impl.1} parent=35 // pred_region
        %s3020 = smul.u32 16, %s15
      $region40: #{_net_v1_forward_impl.1} parent=35 // pred_fallthru
        _
    $region36: #{_net_v1_forward_impl.1} parent=5 // pred_fallthru
      _
    %p3021 = scmp.le.s32.totalorder 2, %s10
    // Predicated region
    $region41: #{_net_v1_forward_impl.1} parent=5 // pred_check
      %p3022 = pneg %p3021
    $region42: #{_net_v1_forward_impl.1} parent=5 // pred_check_branch
      %3024 = sbr.rel (%p3022) target = $region44
    $region43: #{_net_v1_forward_impl.1} parent=5 // pred_region
      %s3025 = ssub.s32 %s10, 2
      // Predicated region
      $region45: #{_net_v1_forward_impl.1} parent=43 // pred_check
        %p3026 = pneg %p128
      $region46: #{_net_v1_forward_impl.1} parent=43 // pred_check_branch
        %3028 = sbr.rel (%p3026) target = $region48
      $region47: #{_net_v1_forward_impl.1} parent=43 // pred_region
        %s3029 = smul.u32 16, %s16
        %p3030 = scmp.lt.s32.totalorder %s3029, 31
        %s3031 = scalar_select %p3030, %s3029, 31
        %s3032 = smul.addr %s3031, 8
        %s3033 = scalar_lea.vmem %s4, %s3032
      $region48: #{_net_v1_forward_impl.1} parent=43 // pred_fallthru
        _
    $region44: #{_net_v1_forward_impl.1} parent=5 // pred_fallthru
      _
  $region6: #{_net_v1_forward_impl.1} parent=0 // loop_footer
    %s14 = sadd.s32 1, %s10
  $region7: #{_net_v1_forward_impl.1} parent=0 // loop_footer_branch
    %9 = sbr.rel target = $region3
  $region8: #{_net_v1_forward_impl.1} parent=0 // loop_exit
    _

</llo_original>
